<compile_context>
chip_gen: v6e
topology: v6e:2x2x1
jax: 0.10.0
libtpu: 0.0.40
codegen_flags: <defaults>
</compile_context>

<pallas_src>
import jax
import jax.numpy as jnp
from jax.experimental import pallas as pl
from jax.experimental.pallas import tpu as pltpu

NEG_SLOPE = 0.01          # nn.LeakyReLU default negative_slope
IN_FEATURES = 1860
TILE_N_MAX = 512          # past the ~85% tile knee, safe on v5e / v6e / v7x


def _leaky_relu(h):
    return jnp.where(h > 0, h, NEG_SLOPE * h)


def discriminator_kernel(x_ref,
                         w1_ref, b1_ref,
                         w2_ref, b2_ref,
                         w3_ref, b3_ref,
                         w4_ref, b4_ref,
                         out_ref):
    # Layer 1: cast the streamed f32 tile to bf16 on the VPU (cheap, hidden
    # under the DMA), run the MXU in bf16 with f32 accumulation.
    x_bf = x_ref[...].astype(jnp.bfloat16)
    h = jnp.dot(x_bf, w1_ref[...],
                preferred_element_type=jnp.float32) + b1_ref[...]
    h = _leaky_relu(h)
    # Layers 2-4 are ~2% of FLOPs; keep them plain f32 (hidden under DMA).
    h = _leaky_relu(jnp.dot(h, w2_ref[...],
                            preferred_element_type=jnp.float32) + b2_ref[...])
    h = _leaky_relu(jnp.dot(h, w3_ref[...],
                            preferred_element_type=jnp.float32) + b3_ref[...])
    logits = jnp.dot(h, w4_ref[...],
                     preferred_element_type=jnp.float32) + b4_ref[...]
    # Packed output block: col 0 = sigmoid, col 1 = logits.
    out_ref[:, 0:1] = jax.nn.sigmoid(logits)
    out_ref[:, 1:2] = logits


def init_params(key):
    """Deterministic param init matching nn.Linear shapes (stored as (in, out))."""
    dims = [(IN_FEATURES, 64), (64, 32), (32, 16), (16, 1)]
    params = []
    for i, (fan_in, fan_out) in enumerate(dims):
        kw, kb, key = jax.random.split(jax.random.fold_in(key, i), 3)
        bound = 1.0 / jnp.sqrt(fan_in)
        w = jax.random.uniform(kw, (fan_in, fan_out), jnp.float32, -bound, bound)
        b = jax.random.uniform(kb, (1, fan_out), jnp.float32, -bound, bound)
        params.append((w, b))
    return params


def discriminator_forward(x, params):
    n = x.shape[0]
    x_flat = x.reshape(n, -1).astype(jnp.float32)   # nn.Flatten(); view, no copy
    assert x_flat.shape[1] == IN_FEATURES, \
        f"expected {IN_FEATURES} features, got {x_flat.shape[1]}"

    # Batch tiling: tile rows in multiples of 8 sublanes, capped at TILE_N_MAX.
    tile_n = min(TILE_N_MAX, ((n + 7) // 8) * 8)
    grid_n = pl.cdiv(n, tile_n)
    padded_out_n = grid_n * tile_n                   # output blocks divide exactly

    (w1, b1), (w2, b2), (w3, b3), (w4, b4) = params
    w1_bf = w1.astype(jnp.bfloat16)                  # tiny, fetched once

    def resident(arr):
        # Full-array block, constant index -> fetched once, stays in VMEM.
        return pl.BlockSpec(arr.shape, lambda i: (0, 0))

    in_specs = [
        pl.BlockSpec((tile_n, IN_FEATURES), lambda i: (i, 0)),  # streamed x (f32)
        resident(w1_bf), resident(b1),
        resident(w2), resident(b2),
        resident(w3), resident(b3),
        resident(w4), resident(b4),
    ]
    out_spec = pl.BlockSpec((tile_n, 2), lambda i: (i, 0))

    flops = 2 * n * (IN_FEATURES * 64 + 64 * 32 + 32 * 16 + 16 * 1)
    bytes_accessed = (x_flat.size * 4 + w1_bf.size * 2
                      + sum(a.size * 4 for a in (b1, w2, b2, w3, b3, w4, b4))
                      + padded_out_n * 2 * 4)

    packed = pl.pallas_call(
        discriminator_kernel,
        out_shape=jax.ShapeDtypeStruct((padded_out_n, 2), jnp.float32),
        grid_spec=pltpu.PrefetchScalarGridSpec(
            num_scalar_prefetch=0,
            grid=(grid_n,),
            in_specs=in_specs,
            out_specs=out_spec,
        ),
        compiler_params=pltpu.CompilerParams(
            dimension_semantics=("parallel",),       # megacore on v7x
            vmem_limit_bytes=32 * 1024 * 1024,       # explicit, fits all gens
        ),
        cost_estimate=pl.CostEstimate(
            flops=flops,
            transcendentals=n,
            bytes_accessed=bytes_accessed,
        ),
    )(x_flat, w1_bf, b1, w2, b2, w3, b3, w4, b4)

    domain_out = packed[:n, 0:1]
    domain_logits = packed[:n, 1:2]
    return domain_out, domain_logits


def reference_forward(x, params):
    h = x.reshape(x.shape[0], -1).astype(jnp.float32)
    for i, (w, b) in enumerate(params):
        h = h @ w + b
        if i < 3:
            h = jnp.where(h > 0, h, NEG_SLOPE * h)
    return jax.nn.sigmoid(h), h


if __name__ == "__main__":
    key = jax.random.PRNGKey(0)
    kx, kp = jax.random.split(key)

    # Small deterministic input: (batch=2, 62, 30) flattens to (2, 1860).
    x = jax.random.normal(kx, (2, 62, 30), dtype=jnp.float32)
    params = init_params(kp)

    domain_out, domain_logits = discriminator_forward(x, params)
    jax.block_until_ready((domain_out, domain_logits))

    ref_out, ref_logits = reference_forward(x, params)
    # bf16 first-layer MXU inputs -> loosened tolerance (f32 accumulation kept).
    assert jnp.allclose(domain_logits, ref_logits, atol=2e-2, rtol=2e-2), (
        domain_logits, ref_logits)
    assert jnp.allclose(domain_out, ref_out, atol=1e-2, rtol=1e-2), (
        domain_out, ref_out)

    print("KERNEL_OK")
</pallas_src>

<mosaic_0001>
module attributes {stable_mosaic.version = 11 : i64} {
  func.func @discriminator_kernel(%arg0: i32, %arg1: memref<8x1860xf32, #tpu.memory_space<vmem>>, %arg2: memref<1860x64xbf16, #tpu.memory_space<vmem>>, %arg3: memref<1x64xf32, #tpu.memory_space<vmem>>, %arg4: memref<64x32xf32, #tpu.memory_space<vmem>>, %arg5: memref<1x32xf32, #tpu.memory_space<vmem>>, %arg6: memref<32x16xf32, #tpu.memory_space<vmem>>, %arg7: memref<1x16xf32, #tpu.memory_space<vmem>>, %arg8: memref<16x1xf32, #tpu.memory_space<vmem>>, %arg9: memref<1x1xf32, #tpu.memory_space<vmem>>, %arg10: memref<8x2xf32, #tpu.memory_space<vmem>>) attributes {dimension_semantics = [#tpu.dimension_semantics<parallel>], iteration_bounds = array<i64: 1>, scalar_prefetch = 0 : i64, scratch_operands = 0 : i64, tpu.core_type = #tpu.core_type<tc>, window_params = [{transform_indices = @transform_0, window_bounds = array<i64: 8, 1860>}, {pipeline_mode = #tpu.pipeline_mode<synchronous>, transform_indices = @transform_1, window_bounds = array<i64: 1860, 64>}, {pipeline_mode = #tpu.pipeline_mode<synchronous>, transform_indices = @transform_2, window_bounds = array<i64: 1, 64>}, {pipeline_mode = #tpu.pipeline_mode<synchronous>, transform_indices = @transform_3, window_bounds = array<i64: 64, 32>}, {pipeline_mode = #tpu.pipeline_mode<synchronous>, transform_indices = @transform_4, window_bounds = array<i64: 1, 32>}, {pipeline_mode = #tpu.pipeline_mode<synchronous>, transform_indices = @transform_5, window_bounds = array<i64: 32, 16>}, {pipeline_mode = #tpu.pipeline_mode<synchronous>, transform_indices = @transform_6, window_bounds = array<i64: 1, 16>}, {pipeline_mode = #tpu.pipeline_mode<synchronous>, transform_indices = @transform_7, window_bounds = array<i64: 16, 1>}, {pipeline_mode = #tpu.pipeline_mode<synchronous>, transform_indices = @transform_8, window_bounds = array<i64: 1, 1>}, {transform_indices = @transform_9, window_bounds = array<i64: 8, 2>}]} {
    %c0 = arith.constant 0 : index
    %c0_0 = arith.constant 0 : index
    %0 = vector.load %arg1[%c0, %c0_0] : memref<8x1860xf32, #tpu.memory_space<vmem>>, vector<8x1860xf32>
    %1 = arith.truncf %0 : vector<8x1860xf32> to vector<8x1860xbf16>
    %c0_1 = arith.constant 0 : index
    %c0_2 = arith.constant 0 : index
    %2 = vector.load %arg2[%c0_1, %c0_2] : memref<1860x64xbf16, #tpu.memory_space<vmem>>, vector<1860x64xbf16>
    %cst = arith.constant dense<0.000000e+00> : vector<8x64xf32>
    %3 = tpu.matmul %1, %2, %cst {dimension_numbers = #tpu.dot_dimension_numbers<[1], [0], [0], [1], [0, 0, 1, 1], [], []>} : vector<8x1860xbf16>, vector<1860x64xbf16>, vector<8x64xf32> -> vector<8x64xf32>
    %c0_3 = arith.constant 0 : index
    %c0_4 = arith.constant 0 : index
    %4 = vector.load %arg3[%c0_3, %c0_4] : memref<1x64xf32, #tpu.memory_space<vmem>>, vector<1x64xf32>
    %5 = vector.broadcast %4 : vector<1x64xf32> to vector<8x64xf32>
    %6 = arith.addf %3, %5 : vector<8x64xf32>
    %cst_5 = arith.constant 0.000000e+00 : f32
    %7 = vector.broadcast %cst_5 : f32 to vector<8x64xf32>
    %8 = arith.cmpf ogt, %6, %7 : vector<8x64xf32>
    %cst_6 = arith.constant 0.00999999977 : f32
    %9 = vector.broadcast %cst_6 : f32 to vector<8x64xf32>
    %10 = arith.mulf %9, %6 : vector<8x64xf32>
    %11 = arith.select %8, %6, %10 : vector<8x64xi1>, vector<8x64xf32>
    %c0_7 = arith.constant 0 : index
    %c0_8 = arith.constant 0 : index
    %12 = vector.load %arg4[%c0_7, %c0_8] : memref<64x32xf32, #tpu.memory_space<vmem>>, vector<64x32xf32>
    %cst_9 = arith.constant dense<0.000000e+00> : vector<8x32xf32>
    %13 = tpu.matmul %11, %12, %cst_9 {dimension_numbers = #tpu.dot_dimension_numbers<[1], [0], [0], [1], [0, 0, 1, 1], [], []>} : vector<8x64xf32>, vector<64x32xf32>, vector<8x32xf32> -> vector<8x32xf32>
    %c0_10 = arith.constant 0 : index
    %c0_11 = arith.constant 0 : index
    %14 = vector.load %arg5[%c0_10, %c0_11] : memref<1x32xf32, #tpu.memory_space<vmem>>, vector<1x32xf32>
    %15 = vector.broadcast %14 : vector<1x32xf32> to vector<8x32xf32>
    %16 = arith.addf %13, %15 : vector<8x32xf32>
    %cst_12 = arith.constant 0.000000e+00 : f32
    %17 = vector.broadcast %cst_12 : f32 to vector<8x32xf32>
    %18 = arith.cmpf ogt, %16, %17 : vector<8x32xf32>
    %cst_13 = arith.constant 0.00999999977 : f32
    %19 = vector.broadcast %cst_13 : f32 to vector<8x32xf32>
    %20 = arith.mulf %19, %16 : vector<8x32xf32>
    %21 = arith.select %18, %16, %20 : vector<8x32xi1>, vector<8x32xf32>
    %c0_14 = arith.constant 0 : index
    %c0_15 = arith.constant 0 : index
    %22 = vector.load %arg6[%c0_14, %c0_15] : memref<32x16xf32, #tpu.memory_space<vmem>>, vector<32x16xf32>
    %cst_16 = arith.constant dense<0.000000e+00> : vector<8x16xf32>
    %23 = tpu.matmul %21, %22, %cst_16 {dimension_numbers = #tpu.dot_dimension_numbers<[1], [0], [0], [1], [0, 0, 1, 1], [], []>} : vector<8x32xf32>, vector<32x16xf32>, vector<8x16xf32> -> vector<8x16xf32>
    %c0_17 = arith.constant 0 : index
    %c0_18 = arith.constant 0 : index
    %24 = vector.load %arg7[%c0_17, %c0_18] : memref<1x16xf32, #tpu.memory_space<vmem>>, vector<1x16xf32>
    %25 = vector.broadcast %24 : vector<1x16xf32> to vector<8x16xf32>
    %26 = arith.addf %23, %25 : vector<8x16xf32>
    %cst_19 = arith.constant 0.000000e+00 : f32
    %27 = vector.broadcast %cst_19 : f32 to vector<8x16xf32>
    %28 = arith.cmpf ogt, %26, %27 : vector<8x16xf32>
    %cst_20 = arith.constant 0.00999999977 : f32
    %29 = vector.broadcast %cst_20 : f32 to vector<8x16xf32>
    %30 = arith.mulf %29, %26 : vector<8x16xf32>
    %31 = arith.select %28, %26, %30 : vector<8x16xi1>, vector<8x16xf32>
    %c0_21 = arith.constant 0 : index
    %c0_22 = arith.constant 0 : index
    %32 = vector.load %arg8[%c0_21, %c0_22] : memref<16x1xf32, #tpu.memory_space<vmem>>, vector<16x1xf32>
    %cst_23 = arith.constant dense<0.000000e+00> : vector<8x1xf32>
    %33 = tpu.matmul %31, %32, %cst_23 {dimension_numbers = #tpu.dot_dimension_numbers<[1], [0], [0], [1], [0, 0, 1, 1], [], []>} : vector<8x16xf32>, vector<16x1xf32>, vector<8x1xf32> -> vector<8x1xf32>
    %c0_24 = arith.constant 0 : index
    %c0_25 = arith.constant 0 : index
    %34 = vector.load %arg9[%c0_24, %c0_25] : memref<1x1xf32, #tpu.memory_space<vmem>>, vector<1x1xf32>
    %35 = vector.broadcast %34 : vector<1x1xf32> to vector<8x1xf32>
    %36 = arith.addf %33, %35 : vector<8x1xf32>
    %37 = arith.negf %36 : vector<8x1xf32>
    %38 = math.exp %37 : vector<8x1xf32>
    %cst_26 = arith.constant 1.000000e+00 : f32
    %39 = vector.broadcast %cst_26 : f32 to vector<8x1xf32>
    %40 = arith.addf %39, %38 : vector<8x1xf32>
    %41 = arith.divf %39, %40 : vector<8x1xf32>
    %c0_27 = arith.constant 0 : index
    %c0_28 = arith.constant 0 : index
    %42 = vector.load %arg10[%c0_27, %c0_28] : memref<8x2xf32, #tpu.memory_space<vmem>>, vector<8x1xf32>
    tpu.vector_store %arg10[%c0_27, %c0_28], %41 {strides = array<i32>} : memref<8x2xf32, #tpu.memory_space<vmem>>, vector<8x1xf32>,
    %c0_29 = arith.constant 0 : index
    %c1 = arith.constant 1 : index
    %43 = vector.load %arg10[%c0_29, %c1] : memref<8x2xf32, #tpu.memory_space<vmem>>, vector<8x1xf32>
    tpu.vector_store %arg10[%c0_29, %c1], %36 {strides = array<i32>} : memref<8x2xf32, #tpu.memory_space<vmem>>, vector<8x1xf32>,
    return
  }
  func.func @transform_0(%arg0: i32) -> (i32, i32) {
    %c0_i32 = arith.constant 0 : i32
    %c0_i32_0 = arith.constant 0 : i32
    return %arg0, %c0_i32 : i32, i32
  }
  func.func @transform_1(%arg0: i32) -> (i32, i32) {
    %c0_i32 = arith.constant 0 : i32
    %c0_i32_0 = arith.constant 0 : i32
    %c0_i32_1 = arith.constant 0 : i32
    return %c0_i32, %c0_i32_0 : i32, i32
  }
  func.func @transform_2(%arg0: i32) -> (i32, i32) {
    %c0_i32 = arith.constant 0 : i32
    %c0_i32_0 = arith.constant 0 : i32
    %c0_i32_1 = arith.constant 0 : i32
    return %c0_i32, %c0_i32_0 : i32, i32
  }
  func.func @transform_3(%arg0: i32) -> (i32, i32) {
    %c0_i32 = arith.constant 0 : i32
    %c0_i32_0 = arith.constant 0 : i32
    %c0_i32_1 = arith.constant 0 : i32
    return %c0_i32, %c0_i32_0 : i32, i32
  }
  func.func @transform_4(%arg0: i32) -> (i32, i32) {
    %c0_i32 = arith.constant 0 : i32
    %c0_i32_0 = arith.constant 0 : i32
    %c0_i32_1 = arith.constant 0 : i32
    return %c0_i32, %c0_i32_0 : i32, i32
  }
  func.func @transform_5(%arg0: i32) -> (i32, i32) {
    %c0_i32 = arith.constant 0 : i32
    %c0_i32_0 = arith.constant 0 : i32
    %c0_i32_1 = arith.constant 0 : i32
    return %c0_i32, %c0_i32_0 : i32, i32
  }
  func.func @transform_6(%arg0: i32) -> (i32, i32) {
    %c0_i32 = arith.constant 0 : i32
    %c0_i32_0 = arith.constant 0 : i32
    %c0_i32_1 = arith.constant 0 : i32
    return %c0_i32, %c0_i32_0 : i32, i32
  }
  func.func @transform_7(%arg0: i32) -> (i32, i32) {
    %c0_i32 = arith.constant 0 : i32
    %c0_i32_0 = arith.constant 0 : i32
    %c0_i32_1 = arith.constant 0 : i32
    return %c0_i32, %c0_i32_0 : i32, i32
  }
  func.func @transform_8(%arg0: i32) -> (i32, i32) {
    %c0_i32 = arith.constant 0 : i32
    %c0_i32_0 = arith.constant 0 : i32
    %c0_i32_1 = arith.constant 0 : i32
    return %c0_i32, %c0_i32_0 : i32, i32
  }
  func.func @transform_9(%arg0: i32) -> (i32, i32) {
    %c0_i32 = arith.constant 0 : i32
    %c0_i32_0 = arith.constant 0 : i32
    return %arg0, %c0_i32 : i32, i32
  }
}

</mosaic_0001>

<llo_original>
// kernel: tpu_custom_call.1
$region0: #{tpu_custom_call.1}
  #allocation0 [shape = 'u32[]', space=smem, size = 0x4, offset = 0x4, fixed_abs, tag = 'smem constant byte address 0x4 - core index']
  #allocation1 [shape = 'u32[144,128]{1,0:T(1,128)}', space=vmem, size = 0x12000, scoped, tag = 'internal scratch']
  #allocation2 [shape = 'f32[1,1]{1,0:T(1,128)S(1)}', space=vmem, size = 0x200, scoped, tag = 'scoped memory for tpu_custom_call.1']
  %s0 = inlined_call_operand.vmem [shape: f32[2,1860], index: 0, kind: input, shape index: {}]
  %s1 = inlined_call_operand.vmem [shape: bf16[1860,64], index: 1, kind: input, shape index: {}]
  %s2 = inlined_call_operand.vmem [shape: f32[1,64], index: 2, kind: input, shape index: {}]
  %s3 = inlined_call_operand.vmem [shape: f32[64,32], index: 3, kind: input, shape index: {}]
  %s4 = inlined_call_operand.vmem [shape: f32[1,32], index: 4, kind: input, shape index: {}]
  %s5 = inlined_call_operand.vmem [shape: f32[32,16], index: 5, kind: input, shape index: {}]
  %s6 = inlined_call_operand.vmem [shape: f32[1,16], index: 6, kind: input, shape index: {}]
  %s7 = inlined_call_operand.vmem [shape: f32[16,1], index: 7, kind: input, shape index: {}]
  %s8 = inlined_call_operand.<no memory space> [shape: f32[1,1], index: 8, kind: input, shape index: {}]
  %s9 = inlined_call_operand.vmem [shape: f32[8,2], index: 9, kind: output, shape index: {}]
  %s10 = sld [smem:[#allocation0]]
  $region46: #{tpu_custom_call.1} parent=0
    _
  %s12 = ssub.s32 1, %s10
  %s13 = scalar_select 0, %s12, %s10
  %v14 = vstv %s8
  %15 = vst [vmem:[#allocation2] sm:$0x1] %v14
  // Predicated region
  $region2: #{tpu_custom_call.1} parent=0 // pred_check
    _
  $region3: #{tpu_custom_call.1} parent=0 // pred_check_branch
    %17 = sbr.rel (0) target = $region5
  $region4: #{tpu_custom_call.1} parent=0 // pred_region
    _
  $region5: #{tpu_custom_call.1} parent=0 // pred_fallthru
    _
  // Predicated region
  $region6: #{tpu_custom_call.1} parent=0 // pred_check
    _
  $region7: #{tpu_custom_call.1} parent=0 // pred_check_branch
    %19 = sbr.rel (0) target = $region9
  $region8: #{tpu_custom_call.1} parent=0 // pred_region
    _
  $region9: #{tpu_custom_call.1} parent=0 // pred_fallthru
    _
  // Predicated region
  $region10: #{tpu_custom_call.1} parent=0 // pred_check
    _
  $region11: #{tpu_custom_call.1} parent=0 // pred_check_branch
    %21 = sbr.rel (0) target = $region13
  $region12: #{tpu_custom_call.1} parent=0 // pred_region
    _
  $region13: #{tpu_custom_call.1} parent=0 // pred_fallthru
    _
  // Predicated region
  $region14: #{tpu_custom_call.1} parent=0 // pred_check
    _
  $region15: #{tpu_custom_call.1} parent=0 // pred_check_branch
    %23 = sbr.rel (0) target = $region17
  $region16: #{tpu_custom_call.1} parent=0 // pred_region
    _
  $region17: #{tpu_custom_call.1} parent=0 // pred_fallthru
    _
  // Predicated region
  $region18: #{tpu_custom_call.1} parent=0 // pred_check
    _
  $region19: #{tpu_custom_call.1} parent=0 // pred_check_branch
    %25 = sbr.rel (0) target = $region21
  $region20: #{tpu_custom_call.1} parent=0 // pred_region
    _
  $region21: #{tpu_custom_call.1} parent=0 // pred_fallthru
    _
  // Predicated region
  $region22: #{tpu_custom_call.1} parent=0 // pred_check
    _
  $region23: #{tpu_custom_call.1} parent=0 // pred_check_branch
    %27 = sbr.rel (0) target = $region25
  $region24: #{tpu_custom_call.1} parent=0 // pred_region
    _
  $region25: #{tpu_custom_call.1} parent=0 // pred_fallthru
    _
  // Predicated region
  $region26: #{tpu_custom_call.1} parent=0 // pred_check
    _
  $region27: #{tpu_custom_call.1} parent=0 // pred_check_branch
    %29 = sbr.rel (0) target = $region29
  $region28: #{tpu_custom_call.1} parent=0 // pred_region
    _
  $region29: #{tpu_custom_call.1} parent=0 // pred_fallthru
    _
  // Predicated region
  $region30: #{tpu_custom_call.1} parent=0 // pred_check
    _
  $region31: #{tpu_custom_call.1} parent=0 // pred_check_branch
    %31 = sbr.rel (0) target = $region33
  $region32: #{tpu_custom_call.1} parent=0 // pred_region
    _
  $region33: #{tpu_custom_call.1} parent=0 // pred_fallthru
    _
  // Predicated region
  $region34: #{tpu_custom_call.1} parent=0 // pred_check
    _
  $region35: #{tpu_custom_call.1} parent=0 // pred_check_branch
    %33 = sbr.rel (0) target = $region37
  $region36: #{tpu_custom_call.1} parent=0 // pred_region
    _
  $region37: #{tpu_custom_call.1} parent=0 // pred_fallthru
    _
  %v35 = vld [vmem:[%s0] sm:$0xff]
  %v36 = vld [vmem:[%s0 + $0x8] sm:$0xff]
  %v37 = vld [vmem:[%s0 + $0x10] sm:$0xff]
  %v38 = vld [vmem:[%s0 + $0x18] sm:$0x3f]
  %v39 = vld [vmem:[%s0 + $0x1e] sm:$0xff]
  %v40 = vld [vmem:[%s0 + $0x26] sm:$0xff]
  %v41 = vld [vmem:[%s0 + $0x2e] sm:$0xff]
  %v42 = vld [vmem:[%s0 + $0x36] sm:$0x3f]
  %v43 = vld [vmem:[%s0 + $0x3c] sm:$0xff]
  %v44 = vld [vmem:[%s0 + $0x44] sm:$0xff]
  %v45 = vld [vmem:[%s0 + $0x4c] sm:$0xff]
  %v46 = vld [vmem:[%s0 + $0x54] sm:$0x3f]
  %v47 = vld [vmem:[%s0 + $0x5a] sm:$0xff]
  %v48 = vld [vmem:[%s0 + $0x62] sm:$0xff]
  %v49 = vld [vmem:[%s0 + $0x6a] sm:$0xff]
  %v50 = vld [vmem:[%s0 + $0x72] sm:$0x3f]
  %v67 = vcombine.low %v35, %v39
  %v68 = vcombine.high %v35, %v39
  %v69 = vcombine.low %v43, %v47
  %v70 = vcombine.high %v43, %v47
  %v72 = vunpack.c.l.s4 1983009808
  %v73 = vunpack.c.0.s8 %v72
  %v74 = vlaneseq
  %v75 = vshrl.u32 %v74, 7
  %v76 = vsub.s32 %v73, %v75
  %v77 = vrot.slane %v67, %v76
  %v79 = vunpack.c.l.s4 1983009808
  %v80 = vunpack.c.0.s8 %v79
  %v81 = vlaneseq
  %v82 = vshrl.u32 %v81, 7
  %v83 = vsub.s32 %v80, %v82
  %v84 = vrot.slane %v68, %v83
  %v86 = vunpack.c.l.s4 1983009808
  %v87 = vunpack.c.0.s8 %v86
  %v88 = vlaneseq
  %v89 = vshrl.u32 %v88, 7
  %v90 = vsub.s32 %v87, %v89
  %v91 = vrot.slane %v69, %v90
  %v93 = vunpack.c.l.s4 1983009808
  %v94 = vunpack.c.0.s8 %v93
  %v95 = vlaneseq
  %v96 = vshrl.u32 %v95, 7
  %v97 = vsub.s32 %v94, %v96
  %v98 = vrot.slane %v70, %v97
  %v99 = vcombine.low %v77, %v91
  %v100 = vcombine.high %v77, %v91
  %v101 = vcombine.low %v84, %v98
  %v102 = vcombine.high %v84, %v98
  %v103 = vcombine.low %v36, %v40
  %v104 = vcombine.high %v36, %v40
  %v105 = vcombine.low %v44, %v48
  %v106 = vcombine.high %v44, %v48
  %v108 = vunpack.c.l.s4 1983009808
  %v109 = vunpack.c.0.s8 %v108
  %v110 = vlaneseq
  %v111 = vshrl.u32 %v110, 7
  %v112 = vsub.s32 %v109, %v111
  %v113 = vrot.slane %v103, %v112
  %v115 = vunpack.c.l.s4 1983009808
  %v116 = vunpack.c.0.s8 %v115
  %v117 = vlaneseq
  %v118 = vshrl.u32 %v117, 7
  %v119 = vsub.s32 %v116, %v118
  %v120 = vrot.slane %v104, %v119
  %v122 = vunpack.c.l.s4 1983009808
  %v123 = vunpack.c.0.s8 %v122
  %v124 = vlaneseq
  %v125 = vshrl.u32 %v124, 7
  %v126 = vsub.s32 %v123, %v125
  %v127 = vrot.slane %v105, %v126
  %v129 = vunpack.c.l.s4 1983009808
  %v130 = vunpack.c.0.s8 %v129
  %v131 = vlaneseq
  %v132 = vshrl.u32 %v131, 7
  %v133 = vsub.s32 %v130, %v132
  %v134 = vrot.slane %v106, %v133
  %v135 = vcombine.low %v113, %v127
  %v136 = vcombine.high %v113, %v127
  %v137 = vcombine.low %v120, %v134
  %v138 = vcombine.high %v120, %v134
  %v139 = vcombine.low %v37, %v41
  %v140 = vcombine.high %v37, %v41
  %v141 = vcombine.low %v45, %v49
  %v142 = vcombine.high %v45, %v49
  %v144 = vunpack.c.l.s4 1983009808
  %v145 = vunpack.c.0.s8 %v144
  %v146 = vlaneseq
  %v147 = vshrl.u32 %v146, 7
  %v148 = vsub.s32 %v145, %v147
  %v149 = vrot.slane %v139, %v148
  %v151 = vunpack.c.l.s4 1983009808
  %v152 = vunpack.c.0.s8 %v151
  %v153 = vlaneseq
  %v154 = vshrl.u32 %v153, 7
  %v155 = vsub.s32 %v152, %v154
  %v156 = vrot.slane %v140, %v155
  %v158 = vunpack.c.l.s4 1983009808
  %v159 = vunpack.c.0.s8 %v158
  %v160 = vlaneseq
  %v161 = vshrl.u32 %v160, 7
  %v162 = vsub.s32 %v159, %v161
  %v163 = vrot.slane %v141, %v162
  %v165 = vunpack.c.l.s4 1983009808
  %v166 = vunpack.c.0.s8 %v165
  %v167 = vlaneseq
  %v168 = vshrl.u32 %v167, 7
  %v169 = vsub.s32 %v166, %v168
  %v170 = vrot.slane %v142, %v169
  %v171 = vcombine.low %v149, %v163
  %v172 = vcombine.high %v149, %v163
  %v173 = vcombine.low %v156, %v170
  %v174 = vcombine.high %v156, %v170
  %v175 = vcombine.low %v38, %v42
  %v176 = vcombine.high %v38, %v42
  %v177 = vcombine.low %v46, %v50
  %v178 = vcombine.high %v46, %v50
  %v180 = vunpack.c.l.s4 1983009808
  %v181 = vunpack.c.0.s8 %v180
  %v182 = vlaneseq
  %v183 = vshrl.u32 %v182, 7
  %v184 = vsub.s32 %v181, %v183
  %v185 = vrot.slane %v175, %v184
  %v187 = vunpack.c.l.s4 1983009808
  %v188 = vunpack.c.0.s8 %v187
  %v189 = vlaneseq
  %v190 = vshrl.u32 %v189, 7
  %v191 = vsub.s32 %v188, %v190
  %v192 = vrot.slane %v176, %v191
  %v194 = vunpack.c.l.s4 1983009808
  %v195 = vunpack.c.0.s8 %v194
  %v196 = vlaneseq
  %v197 = vshrl.u32 %v196, 7
  %v198 = vsub.s32 %v195, %v197
  %v199 = vrot.slane %v177, %v198
  %v201 = vunpack.c.l.s4 1983009808
  %v202 = vunpack.c.0.s8 %v201
  %v203 = vlaneseq
  %v204 = vshrl.u32 %v203, 7
  %v205 = vsub.s32 %v202, %v204
  %v206 = vrot.slane %v178, %v205
  %v207 = vcombine.low %v185, %v199
  %v208 = vcombine.high %v185, %v199
  %v209 = vcombine.low %v192, %v206
  %v225 = vpack.c.bf16 %v99, %v99
  %v226 = vpack.c.bf16 %v100, %v100
  %v227 = vpack.c.bf16 %v101, %v101
  %v228 = vpack.c.bf16 %v102, %v102
  %v229 = vpack.c.bf16 %v135, %v135
  %v230 = vpack.c.bf16 %v136, %v136
  %v231 = vpack.c.bf16 %v137, %v137
  %v232 = vpack.c.bf16 %v138, %v138
  %v233 = vpack.c.bf16 %v171, %v171
  %v234 = vpack.c.bf16 %v172, %v172
  %v235 = vpack.c.bf16 %v173, %v173
  %v236 = vpack.c.bf16 %v174, %v174
  %v237 = vpack.c.bf16 %v207, %v207
  %v238 = vpack.c.bf16 %v208, %v208
  %v239 = vpack.c.bf16 %v209, %v209
  %v240 = vld [vmem:[%s1] sm:$0xf]
  %v241 = vld [vmem:[%s1 + $0x4] sm:$0xf]
  %v242 = vld [vmem:[%s1 + $0x8] sm:$0xf]
  %v243 = vld [vmem:[%s1 + $0xc] sm:$0xf]
  %v244 = vld [vmem:[%s1 + $0x10] sm:$0xf]
  %v245 = vld [vmem:[%s1 + $0x14] sm:$0xf]
  %v246 = vld [vmem:[%s1 + $0x18] sm:$0xf]
  %v247 = vld [vmem:[%s1 + $0x1c] sm:$0xf]
  %v248 = vld [vmem:[%s1 + $0x20] sm:$0xf]
  %v249 = vld [vmem:[%s1 + $0x24] sm:$0xf]
  %v250 = vld [vmem:[%s1 + $0x28] sm:$0xf]
  %v251 = vld [vmem:[%s1 + $0x2c] sm:$0xf]
  %v252 = vld [vmem:[%s1 + $0x30] sm:$0xf]
  %v253 = vld [vmem:[%s1 + $0x34] sm:$0xf]
  %v254 = vld [vmem:[%s1 + $0x38] sm:$0xf]
  %v255 = vld [vmem:[%s1 + $0x3c] sm:$0xf]
  %v256 = vld [vmem:[%s1 + $0x40] sm:$0xf]
  %v257 = vld [vmem:[%s1 + $0x44] sm:$0xf]
  %v258 = vld [vmem:[%s1 + $0x48] sm:$0xf]
  %v259 = vld [vmem:[%s1 + $0x4c] sm:$0xf]
  %v260 = vld [vmem:[%s1 + $0x50] sm:$0xf]
  %v261 = vld [vmem:[%s1 + $0x54] sm:$0xf]
  %v262 = vld [vmem:[%s1 + $0x58] sm:$0xf]
  %v263 = vld [vmem:[%s1 + $0x5c] sm:$0xf]
  %v264 = vld [vmem:[%s1 + $0x60] sm:$0xf]
  %v265 = vld [vmem:[%s1 + $0x64] sm:$0xf]
  %v266 = vld [vmem:[%s1 + $0x68] sm:$0xf]
  %v267 = vld [vmem:[%s1 + $0x6c] sm:$0xf]
  %v268 = vld [vmem:[%s1 + $0x70] sm:$0xf]
  %v269 = vld [vmem:[%s1 + $0x74] sm:$0xf]
  %v270 = vld [vmem:[%s1 + $0x78] sm:$0xf]
  %v271 = vld [vmem:[%s1 + $0x7c] sm:$0xf]
  %v272 = vld [vmem:[%s1 + $0x80] sm:$0xf]
  %v273 = vld [vmem:[%s1 + $0x84] sm:$0xf]
  %v274 = vld [vmem:[%s1 + $0x88] sm:$0xf]
  %v275 = vld [vmem:[%s1 + $0x8c] sm:$0xf]
  %v276 = vld [vmem:[%s1 + $0x90] sm:$0xf]
  %v277 = vld [vmem:[%s1 + $0x94] sm:$0xf]
  %v278 = vld [vmem:[%s1 + $0x98] sm:$0xf]
  %v279 = vld [vmem:[%s1 + $0x9c] sm:$0xf]
  %v280 = vld [vmem:[%s1 + $0xa0] sm:$0xf]
  %v281 = vld [vmem:[%s1 + $0xa4] sm:$0xf]
  %v282 = vld [vmem:[%s1 + $0xa8] sm:$0xf]
  %v283 = vld [vmem:[%s1 + $0xac] sm:$0xf]
  %v284 = vld [vmem:[%s1 + $0xb0] sm:$0xf]
  %v285 = vld [vmem:[%s1 + $0xb4] sm:$0xf]
  %v286 = vld [vmem:[%s1 + $0xb8] sm:$0xf]
  %v287 = vld [vmem:[%s1 + $0xbc] sm:$0xf]
  %v288 = vld [vmem:[%s1 + $0xc0] sm:$0xf]
  %v289 = vld [vmem:[%s1 + $0xc4] sm:$0xf]
  %v290 = vld [vmem:[%s1 + $0xc8] sm:$0xf]
  %v291 = vld [vmem:[%s1 + $0xcc] sm:$0xf]
  %v292 = vld [vmem:[%s1 + $0xd0] sm:$0xf]
  %v293 = vld [vmem:[%s1 + $0xd4] sm:$0xf]
  %v294 = vld [vmem:[%s1 + $0xd8] sm:$0xf]
  %v295 = vld [vmem:[%s1 + $0xdc] sm:$0xf]
  %v296 = vld [vmem:[%s1 + $0xe0] sm:$0xf]
  %v297 = vld [vmem:[%s1 + $0xe4] sm:$0xf]
  %v298 = vld [vmem:[%s1 + $0xe8] sm:$0xf]
  %v299 = vld [vmem:[%s1 + $0xec] sm:$0xf]
  %v300 = vld [vmem:[%s1 + $0xf0] sm:$0xf]
  %v301 = vld [vmem:[%s1 + $0xf4] sm:$0xf]
  %v302 = vld [vmem:[%s1 + $0xf8] sm:$0xf]
  %v303 = vld [vmem:[%s1 + $0xfc] sm:$0xf]
  %v304 = vld [vmem:[%s1 + $0x100] sm:$0xf]
  %v305 = vld [vmem:[%s1 + $0x104] sm:$0xf]
  %v306 = vld [vmem:[%s1 + $0x108] sm:$0xf]
  %v307 = vld [vmem:[%s1 + $0x10c] sm:$0xf]
  %v308 = vld [vmem:[%s1 + $0x110] sm:$0xf]
  %v309 = vld [vmem:[%s1 + $0x114] sm:$0xf]
  %v310 = vld [vmem:[%s1 + $0x118] sm:$0xf]
  %v311 = vld [vmem:[%s1 + $0x11c] sm:$0xf]
  %v312 = vld [vmem:[%s1 + $0x120] sm:$0xf]
  %v313 = vld [vmem:[%s1 + $0x124] sm:$0xf]
  %v314 = vld [vmem:[%s1 + $0x128] sm:$0xf]
  %v315 = vld [vmem:[%s1 + $0x12c] sm:$0xf]
  %v316 = vld [vmem:[%s1 + $0x130] sm:$0xf]
  %v317 = vld [vmem:[%s1 + $0x134] sm:$0xf]
  %v318 = vld [vmem:[%s1 + $0x138] sm:$0xf]
  %v319 = vld [vmem:[%s1 + $0x13c] sm:$0xf]
  %v320 = vld [vmem:[%s1 + $0x140] sm:$0xf]
  %v321 = vld [vmem:[%s1 + $0x144] sm:$0xf]
  %v322 = vld [vmem:[%s1 + $0x148] sm:$0xf]
  %v323 = vld [vmem:[%s1 + $0x14c] sm:$0xf]
  %v324 = vld [vmem:[%s1 + $0x150] sm:$0xf]
  %v325 = vld [vmem:[%s1 + $0x154] sm:$0xf]
  %v326 = vld [vmem:[%s1 + $0x158] sm:$0xf]
  %v327 = vld [vmem:[%s1 + $0x15c] sm:$0xf]
  %v328 = vld [vmem:[%s1 + $0x160] sm:$0xf]
  %v329 = vld [vmem:[%s1 + $0x164] sm:$0xf]
  %v330 = vld [vmem:[%s1 + $0x168] sm:$0xf]
  %v331 = vld [vmem:[%s1 + $0x16c] sm:$0xf]
  %v332 = vld [vmem:[%s1 + $0x170] sm:$0xf]
  %v333 = vld [vmem:[%s1 + $0x174] sm:$0xf]
  %v334 = vld [vmem:[%s1 + $0x178] sm:$0xf]
  %v335 = vld [vmem:[%s1 + $0x17c] sm:$0xf]
  %v336 = vld [vmem:[%s1 + $0x180] sm:$0xf]
  %v337 = vld [vmem:[%s1 + $0x184] sm:$0xf]
  %v338 = vld [vmem:[%s1 + $0x188] sm:$0xf]
  %v339 = vld [vmem:[%s1 + $0x18c] sm:$0xf]
  %v340 = vld [vmem:[%s1 + $0x190] sm:$0xf]
  %v341 = vld [vmem:[%s1 + $0x194] sm:$0xf]
  %v342 = vld [vmem:[%s1 + $0x198] sm:$0xf]
  %v343 = vld [vmem:[%s1 + $0x19c] sm:$0xf]
  %v344 = vld [vmem:[%s1 + $0x1a0] sm:$0xf]
  %v345 = vld [vmem:[%s1 + $0x1a4] sm:$0xf]
  %v346 = vld [vmem:[%s1 + $0x1a8] sm:$0xf]
  %v347 = vld [vmem:[%s1 + $0x1ac] sm:$0xf]
  %v348 = vld [vmem:[%s1 + $0x1b0] sm:$0xf]
  %v349 = vld [vmem:[%s1 + $0x1b4] sm:$0xf]
  %v350 = vld [vmem:[%s1 + $0x1b8] sm:$0xf]
  %v351 = vld [vmem:[%s1 + $0x1bc] sm:$0xf]
  %v352 = vld [vmem:[%s1 + $0x1c0] sm:$0xf]
  %v353 = vld [vmem:[%s1 + $0x1c4] sm:$0xf]
  %v354 = vld [vmem:[%s1 + $0x1c8] sm:$0xf]
  %v355 = vld [vmem:[%s1 + $0x1cc] sm:$0xf]
  %v356 = vld [vmem:[%s1 + $0x1d0] sm:$0xf]
  %v357 = vld [vmem:[%s1 + $0x1d4] sm:$0xf]
  %v358 = vld [vmem:[%s1 + $0x1d8] sm:$0xf]
  %v359 = vld [vmem:[%s1 + $0x1dc] sm:$0xf]
  %v360 = vld [vmem:[%s1 + $0x1e0] sm:$0xf]
  %v361 = vld [vmem:[%s1 + $0x1e4] sm:$0xf]
  %v362 = vld [vmem:[%s1 + $0x1e8] sm:$0xf]
  %v363 = vld [vmem:[%s1 + $0x1ec] sm:$0xf]
  %v364 = vld [vmem:[%s1 + $0x1f0] sm:$0xf]
  %v365 = vld [vmem:[%s1 + $0x1f4] sm:$0xf]
  %v366 = vld [vmem:[%s1 + $0x1f8] sm:$0xf]
  %v367 = vld [vmem:[%s1 + $0x1fc] sm:$0xf]
  %v368 = vld [vmem:[%s1 + $0x200] sm:$0xf]
  %v369 = vld [vmem:[%s1 + $0x204] sm:$0xf]
  %v370 = vld [vmem:[%s1 + $0x208] sm:$0xf]
  %v371 = vld [vmem:[%s1 + $0x20c] sm:$0xf]
  %v372 = vld [vmem:[%s1 + $0x210] sm:$0xf]
  %v373 = vld [vmem:[%s1 + $0x214] sm:$0xf]
  %v374 = vld [vmem:[%s1 + $0x218] sm:$0xf]
  %v375 = vld [vmem:[%s1 + $0x21c] sm:$0xf]
  %v376 = vld [vmem:[%s1 + $0x220] sm:$0xf]
  %v377 = vld [vmem:[%s1 + $0x224] sm:$0xf]
  %v378 = vld [vmem:[%s1 + $0x228] sm:$0xf]
  %v379 = vld [vmem:[%s1 + $0x22c] sm:$0xf]
  %v380 = vld [vmem:[%s1 + $0x230] sm:$0xf]
  %v381 = vld [vmem:[%s1 + $0x234] sm:$0xf]
  %v382 = vld [vmem:[%s1 + $0x238] sm:$0xf]
  %v383 = vld [vmem:[%s1 + $0x23c] sm:$0xf]
  %v384 = vld [vmem:[%s1 + $0x240] sm:$0xf]
  %v385 = vld [vmem:[%s1 + $0x244] sm:$0xf]
  %v386 = vld [vmem:[%s1 + $0x248] sm:$0xf]
  %v387 = vld [vmem:[%s1 + $0x24c] sm:$0xf]
  %v388 = vld [vmem:[%s1 + $0x250] sm:$0xf]
  %v389 = vld [vmem:[%s1 + $0x254] sm:$0xf]
  %v390 = vld [vmem:[%s1 + $0x258] sm:$0xf]
  %v391 = vld [vmem:[%s1 + $0x25c] sm:$0xf]
  %v392 = vld [vmem:[%s1 + $0x260] sm:$0xf]
  %v393 = vld [vmem:[%s1 + $0x264] sm:$0xf]
  %v394 = vld [vmem:[%s1 + $0x268] sm:$0xf]
  %v395 = vld [vmem:[%s1 + $0x26c] sm:$0xf]
  %v396 = vld [vmem:[%s1 + $0x270] sm:$0xf]
  %v397 = vld [vmem:[%s1 + $0x274] sm:$0xf]
  %v398 = vld [vmem:[%s1 + $0x278] sm:$0xf]
  %v399 = vld [vmem:[%s1 + $0x27c] sm:$0xf]
  %v400 = vld [vmem:[%s1 + $0x280] sm:$0xf]
  %v401 = vld [vmem:[%s1 + $0x284] sm:$0xf]
  %v402 = vld [vmem:[%s1 + $0x288] sm:$0xf]
  %v403 = vld [vmem:[%s1 + $0x28c] sm:$0xf]
  %v404 = vld [vmem:[%s1 + $0x290] sm:$0xf]
  %v405 = vld [vmem:[%s1 + $0x294] sm:$0xf]
  %v406 = vld [vmem:[%s1 + $0x298] sm:$0xf]
  %v407 = vld [vmem:[%s1 + $0x29c] sm:$0xf]
  %v408 = vld [vmem:[%s1 + $0x2a0] sm:$0xf]
  %v409 = vld [vmem:[%s1 + $0x2a4] sm:$0xf]
  %v410 = vld [vmem:[%s1 + $0x2a8] sm:$0xf]
  %v411 = vld [vmem:[%s1 + $0x2ac] sm:$0xf]
  %v412 = vld [vmem:[%s1 + $0x2b0] sm:$0xf]
  %v413 = vld [vmem:[%s1 + $0x2b4] sm:$0xf]
  %v414 = vld [vmem:[%s1 + $0x2b8] sm:$0xf]
  %v415 = vld [vmem:[%s1 + $0x2bc] sm:$0xf]
  %v416 = vld [vmem:[%s1 + $0x2c0] sm:$0xf]
  %v417 = vld [vmem:[%s1 + $0x2c4] sm:$0xf]
  %v418 = vld [vmem:[%s1 + $0x2c8] sm:$0xf]
  %v419 = vld [vmem:[%s1 + $0x2cc] sm:$0xf]
  %v420 = vld [vmem:[%s1 + $0x2d0] sm:$0xf]
  %v421 = vld [vmem:[%s1 + $0x2d4] sm:$0xf]
  %v422 = vld [vmem:[%s1 + $0x2d8] sm:$0xf]
  %v423 = vld [vmem:[%s1 + $0x2dc] sm:$0xf]
  %v424 = vld [vmem:[%s1 + $0x2e0] sm:$0xf]
  %v425 = vld [vmem:[%s1 + $0x2e4] sm:$0xf]
  %v426 = vld [vmem:[%s1 + $0x2e8] sm:$0xf]
  %v427 = vld [vmem:[%s1 + $0x2ec] sm:$0xf]
  %v428 = vld [vmem:[%s1 + $0x2f0] sm:$0xf]
  %v429 = vld [vmem:[%s1 + $0x2f4] sm:$0xf]
  %v430 = vld [vmem:[%s1 + $0x2f8] sm:$0xf]
  %v431 = vld [vmem:[%s1 + $0x2fc] sm:$0xf]
  %v432 = vld [vmem:[%s1 + $0x300] sm:$0xf]
  %v433 = vld [vmem:[%s1 + $0x304] sm:$0xf]
  %v434 = vld [vmem:[%s1 + $0x308] sm:$0xf]
  %v435 = vld [vmem:[%s1 + $0x30c] sm:$0xf]
  %v436 = vld [vmem:[%s1 + $0x310] sm:$0xf]
  %v437 = vld [vmem:[%s1 + $0x314] sm:$0xf]
  %v438 = vld [vmem:[%s1 + $0x318] sm:$0xf]
  %v439 = vld [vmem:[%s1 + $0x31c] sm:$0xf]
  %v440 = vld [vmem:[%s1 + $0x320] sm:$0xf]
  %v441 = vld [vmem:[%s1 + $0x324] sm:$0xf]
  %v442 = vld [vmem:[%s1 + $0x328] sm:$0xf]
  %v443 = vld [vmem:[%s1 + $0x32c] sm:$0xf]
  %v444 = vld [vmem:[%s1 + $0x330] sm:$0xf]
  %v445 = vld [vmem:[%s1 + $0x334] sm:$0xf]
  %v446 = vld [vmem:[%s1 + $0x338] sm:$0xf]
  %v447 = vld [vmem:[%s1 + $0x33c] sm:$0xf]
  %v448 = vld [vmem:[%s1 + $0x340] sm:$0xf]
  %v449 = vld [vmem:[%s1 + $0x344] sm:$0xf]
  %v450 = vld [vmem:[%s1 + $0x348] sm:$0xf]
  %v451 = vld [vmem:[%s1 + $0x34c] sm:$0xf]
  %v452 = vld [vmem:[%s1 + $0x350] sm:$0xf]
  %v453 = vld [vmem:[%s1 + $0x354] sm:$0xf]
  %v454 = vld [vmem:[%s1 + $0x358] sm:$0xf]
  %v455 = vld [vmem:[%s1 + $0x35c] sm:$0xf]
  %v456 = vld [vmem:[%s1 + $0x360] sm:$0xf]
  %v457 = vld [vmem:[%s1 + $0x364] sm:$0xf]
  %v458 = vld [vmem:[%s1 + $0x368] sm:$0xf]
  %v459 = vld [vmem:[%s1 + $0x36c] sm:$0xf]
  %v460 = vld [vmem:[%s1 + $0x370] sm:$0xf]
  %v461 = vld [vmem:[%s1 + $0x374] sm:$0xf]
  %v462 = vld [vmem:[%s1 + $0x378] sm:$0xf]
  %v463 = vld [vmem:[%s1 + $0x37c] sm:$0xf]
  %v464 = vld [vmem:[%s1 + $0x380] sm:$0xf]
  %v465 = vld [vmem:[%s1 + $0x384] sm:$0xf]
  %v466 = vld [vmem:[%s1 + $0x388] sm:$0xf]
  %v467 = vld [vmem:[%s1 + $0x38c] sm:$0xf]
  %v468 = vld [vmem:[%s1 + $0x390] sm:$0xf]
  %v469 = vld [vmem:[%s1 + $0x394] sm:$0xf]
  %v470 = vld [vmem:[%s1 + $0x398] sm:$0xf]
  %v471 = vld [vmem:[%s1 + $0x39c] sm:$0xf]
  %v472 = vld [vmem:[%s1 + $0x3a0] sm:$0x3]
  %v473 = vld [vmem:[%s2] sm:$0x1]
  %v475 = vlaneseq
  %v476 = vshrl.u32 %v475, 7
  %v477 = vsub.s32 0, %v476
  %v478 = vrot.slane %v473, %v477
  %v713 = vunpack.c.l.b16 %v240
  %v714 = vunpack.c.l.b16 %v241
  %v715 = vunpack.c.l.b16 %v242
  %v716 = vunpack.c.l.b16 %v243
  %v717 = vunpack.c.l.b16 %v244
  %v718 = vunpack.c.l.b16 %v245
  %v719 = vunpack.c.l.b16 %v246
  %v720 = vunpack.c.l.b16 %v247
  %v721 = vunpack.c.l.b16 %v248
  %v722 = vunpack.c.l.b16 %v249
  %v723 = vunpack.c.l.b16 %v250
  %v724 = vunpack.c.l.b16 %v251
  %v725 = vunpack.c.l.b16 %v252
  %v726 = vunpack.c.l.b16 %v253
  %v727 = vunpack.c.l.b16 %v254
  %v728 = vunpack.c.l.b16 %v255
  %v729 = vunpack.c.l.b16 %v256
  %v730 = vunpack.c.l.b16 %v257
  %v731 = vunpack.c.l.b16 %v258
  %v732 = vunpack.c.l.b16 %v259
  %v733 = vunpack.c.l.b16 %v260
  %v734 = vunpack.c.l.b16 %v261
  %v735 = vunpack.c.l.b16 %v262
  %v736 = vunpack.c.l.b16 %v263
  %v737 = vunpack.c.l.b16 %v264
  %v738 = vunpack.c.l.b16 %v265
  %v739 = vunpack.c.l.b16 %v266
  %v740 = vunpack.c.l.b16 %v267
  %v741 = vunpack.c.l.b16 %v268
  %v742 = vunpack.c.l.b16 %v269
  %v743 = vunpack.c.l.b16 %v270
  %v744 = vunpack.c.l.b16 %v271
  %v745 = vunpack.c.l.b16 %v272
  %v746 = vunpack.c.l.b16 %v273
  %v747 = vunpack.c.l.b16 %v274
  %v748 = vunpack.c.l.b16 %v275
  %v749 = vunpack.c.l.b16 %v276
  %v750 = vunpack.c.l.b16 %v277
  %v751 = vunpack.c.l.b16 %v278
  %v752 = vunpack.c.l.b16 %v279
  %v753 = vunpack.c.l.b16 %v280
  %v754 = vunpack.c.l.b16 %v281
  %v755 = vunpack.c.l.b16 %v282
  %v756 = vunpack.c.l.b16 %v283
  %v757 = vunpack.c.l.b16 %v284
  %v758 = vunpack.c.l.b16 %v285
  %v759 = vunpack.c.l.b16 %v286
  %v760 = vunpack.c.l.b16 %v287
  %v761 = vunpack.c.l.b16 %v288
  %v762 = vunpack.c.l.b16 %v289
  %v763 = vunpack.c.l.b16 %v290
  %v764 = vunpack.c.l.b16 %v291
  %v765 = vunpack.c.l.b16 %v292
  %v766 = vunpack.c.l.b16 %v293
  %v767 = vunpack.c.l.b16 %v294
  %v768 = vunpack.c.l.b16 %v295
  %v769 = vunpack.c.l.b16 %v296
  %v770 = vunpack.c.l.b16 %v297
  %v771 = vunpack.c.l.b16 %v298
  %v772 = vunpack.c.l.b16 %v299
  %v773 = vunpack.c.l.b16 %v300
  %v774 = vunpack.c.l.b16 %v301
  %v775 = vunpack.c.l.b16 %v302
  %v776 = vunpack.c.l.b16 %v303
  %v777 = vunpack.c.l.b16 %v304
  %v778 = vunpack.c.l.b16 %v305
  %v779 = vunpack.c.l.b16 %v306
  %v780 = vunpack.c.l.b16 %v307
  %v781 = vunpack.c.l.b16 %v308
  %v782 = vunpack.c.l.b16 %v309
  %v783 = vunpack.c.l.b16 %v310
  %v784 = vunpack.c.l.b16 %v311
  %v785 = vunpack.c.l.b16 %v312
  %v786 = vunpack.c.l.b16 %v313
  %v787 = vunpack.c.l.b16 %v314
  %v788 = vunpack.c.l.b16 %v315
  %v789 = vunpack.c.l.b16 %v316
  %v790 = vunpack.c.l.b16 %v317
  %v791 = vunpack.c.l.b16 %v318
  %v792 = vunpack.c.l.b16 %v319
  %v793 = vunpack.c.l.b16 %v320
  %v794 = vunpack.c.l.b16 %v321
  %v795 = vunpack.c.l.b16 %v322
  %v796 = vunpack.c.l.b16 %v323
  %v797 = vunpack.c.l.b16 %v324
  %v798 = vunpack.c.l.b16 %v325
  %v799 = vunpack.c.l.b16 %v326
  %v800 = vunpack.c.l.b16 %v327
  %v801 = vunpack.c.l.b16 %v328
  %v802 = vunpack.c.l.b16 %v329
  %v803 = vunpack.c.l.b16 %v330
  %v804 = vunpack.c.l.b16 %v331
  %v805 = vunpack.c.l.b16 %v332
  %v806 = vunpack.c.l.b16 %v333
  %v807 = vunpack.c.l.b16 %v334
  %v808 = vunpack.c.l.b16 %v335
  %v809 = vunpack.c.l.b16 %v336
  %v810 = vunpack.c.l.b16 %v337
  %v811 = vunpack.c.l.b16 %v338
  %v812 = vunpack.c.l.b16 %v339
  %v813 = vunpack.c.l.b16 %v340
  %v814 = vunpack.c.l.b16 %v341
  %v815 = vunpack.c.l.b16 %v342
  %v816 = vunpack.c.l.b16 %v343
  %v817 = vunpack.c.l.b16 %v344
  %v818 = vunpack.c.l.b16 %v345
  %v819 = vunpack.c.l.b16 %v346
  %v820 = vunpack.c.l.b16 %v347
  %v821 = vunpack.c.l.b16 %v348
  %v822 = vunpack.c.l.b16 %v349
  %v823 = vunpack.c.l.b16 %v350
  %v824 = vunpack.c.l.b16 %v351
  %v825 = vunpack.c.l.b16 %v352
  %v826 = vunpack.c.l.b16 %v353
  %v827 = vunpack.c.l.b16 %v354
  %v828 = vunpack.c.l.b16 %v355
  %v829 = vunpack.c.l.b16 %v356
  %v830 = vunpack.c.l.b16 %v357
  %v831 = vunpack.c.l.b16 %v358
  %v832 = vunpack.c.l.b16 %v359
  %v833 = vunpack.c.l.b16 %v360
  %v834 = vunpack.c.l.b16 %v361
  %v835 = vunpack.c.l.b16 %v362
  %v836 = vunpack.c.l.b16 %v363
  %v837 = vunpack.c.l.b16 %v364
  %v838 = vunpack.c.l.b16 %v365
  %v839 = vunpack.c.l.b16 %v366
  %v840 = vunpack.c.l.b16 %v367
  %v841 = vunpack.c.l.b16 %v368
  %v842 = vunpack.c.l.b16 %v369
  %v843 = vunpack.c.l.b16 %v370
  %v844 = vunpack.c.l.b16 %v371
  %v845 = vunpack.c.l.b16 %v372
  %v846 = vunpack.c.l.b16 %v373
  %v847 = vunpack.c.l.b16 %v374
  %v848 = vunpack.c.l.b16 %v375
  %v849 = vunpack.c.l.b16 %v376
  %v850 = vunpack.c.l.b16 %v377
  %v851 = vunpack.c.l.b16 %v378
  %v852 = vunpack.c.l.b16 %v379
  %v853 = vunpack.c.l.b16 %v380
  %v854 = vunpack.c.l.b16 %v381
  %v855 = vunpack.c.l.b16 %v382
  %v856 = vunpack.c.l.b16 %v383
  %v857 = vunpack.c.l.b16 %v384
  %v858 = vunpack.c.l.b16 %v385
  %v859 = vunpack.c.l.b16 %v386
  %v860 = vunpack.c.l.b16 %v387
  %v861 = vunpack.c.l.b16 %v388
  %v862 = vunpack.c.l.b16 %v389
  %v863 = vunpack.c.l.b16 %v390
  %v864 = vunpack.c.l.b16 %v391
  %v865 = vunpack.c.l.b16 %v392
  %v866 = vunpack.c.l.b16 %v393
  %v867 = vunpack.c.l.b16 %v394
  %v868 = vunpack.c.l.b16 %v395
  %v869 = vunpack.c.l.b16 %v396
  %v870 = vunpack.c.l.b16 %v397
  %v871 = vunpack.c.l.b16 %v398
  %v872 = vunpack.c.l.b16 %v399
  %v873 = vunpack.c.l.b16 %v400
  %v874 = vunpack.c.l.b16 %v401
  %v875 = vunpack.c.l.b16 %v402
  %v876 = vunpack.c.l.b16 %v403
  %v877 = vunpack.c.l.b16 %v404
  %v878 = vunpack.c.l.b16 %v405
  %v879 = vunpack.c.l.b16 %v406
  %v880 = vunpack.c.l.b16 %v407
  %v881 = vunpack.c.l.b16 %v408
  %v882 = vunpack.c.l.b16 %v409
  %v883 = vunpack.c.l.b16 %v410
  %v884 = vunpack.c.l.b16 %v411
  %v885 = vunpack.c.l.b16 %v412
  %v886 = vunpack.c.l.b16 %v413
  %v887 = vunpack.c.l.b16 %v414
  %v888 = vunpack.c.l.b16 %v415
  %v889 = vunpack.c.l.b16 %v416
  %v890 = vunpack.c.l.b16 %v417
  %v891 = vunpack.c.l.b16 %v418
  %v892 = vunpack.c.l.b16 %v419
  %v893 = vunpack.c.l.b16 %v420
  %v894 = vunpack.c.l.b16 %v421
  %v895 = vunpack.c.l.b16 %v422
  %v896 = vunpack.c.l.b16 %v423
  %v897 = vunpack.c.l.b16 %v424
  %v898 = vunpack.c.l.b16 %v425
  %v899 = vunpack.c.l.b16 %v426
  %v900 = vunpack.c.l.b16 %v427
  %v901 = vunpack.c.l.b16 %v428
  %v902 = vunpack.c.l.b16 %v429
  %v903 = vunpack.c.l.b16 %v430
  %v904 = vunpack.c.l.b16 %v431
  %v905 = vunpack.c.l.b16 %v432
  %v906 = vunpack.c.l.b16 %v433
  %v907 = vunpack.c.l.b16 %v434
  %v908 = vunpack.c.l.b16 %v435
  %v909 = vunpack.c.l.b16 %v436
  %v910 = vunpack.c.l.b16 %v437
  %v911 = vunpack.c.l.b16 %v438
  %v912 = vunpack.c.l.b16 %v439
  %v913 = vunpack.c.l.b16 %v440
  %v914 = vunpack.c.l.b16 %v441
  %v915 = vunpack.c.l.b16 %v442
  %v916 = vunpack.c.l.b16 %v443
  %v917 = vunpack.c.l.b16 %v444
  %v918 = vunpack.c.l.b16 %v445
  %v919 = vunpack.c.l.b16 %v446
  %v920 = vunpack.c.l.b16 %v447
  %v921 = vunpack.c.l.b16 %v448
  %v922 = vunpack.c.l.b16 %v449
  %v923 = vunpack.c.l.b16 %v450
  %v924 = vunpack.c.l.b16 %v451
  %v925 = vunpack.c.l.b16 %v452
  %v926 = vunpack.c.l.b16 %v453
  %v927 = vunpack.c.l.b16 %v454
  %v928 = vunpack.c.l.b16 %v455
  %v929 = vunpack.c.l.b16 %v456
  %v930 = vunpack.c.l.b16 %v457
  %v931 = vunpack.c.l.b16 %v458
  %v932 = vunpack.c.l.b16 %v459
  %v933 = vunpack.c.l.b16 %v460
  %v934 = vunpack.c.l.b16 %v461
  %v935 = vunpack.c.l.b16 %v462
  %v936 = vunpack.c.l.b16 %v463
  %v937 = vunpack.c.l.b16 %v464
  %v938 = vunpack.c.l.b16 %v465
  %v939 = vunpack.c.l.b16 %v466
  %v940 = vunpack.c.l.b16 %v467
  %v941 = vunpack.c.l.b16 %v468
  %v942 = vunpack.c.l.b16 %v469
  %v943 = vunpack.c.l.b16 %v470
  %v944 = vunpack.c.l.b16 %v471
  %v945 = vunpack.c.l.b16 %v472
  %v946 = vpack.c.b16 %v714, %v713
  %v947 = vpack.c.b16 %v716, %v715
  %v948 = vpack.c.b16 %v718, %v717
  %v949 = vpack.c.b16 %v720, %v719
  %v950 = vpack.c.b16 %v722, %v721
  %v951 = vpack.c.b16 %v724, %v723
  %v952 = vpack.c.b16 %v726, %v725
  %v953 = vpack.c.b16 %v728, %v727
  %v954 = vpack.c.b16 %v730, %v729
  %v955 = vpack.c.b16 %v732, %v731
  %v956 = vpack.c.b16 %v734, %v733
  %v957 = vpack.c.b16 %v736, %v735
  %v958 = vpack.c.b16 %v738, %v737
  %v959 = vpack.c.b16 %v740, %v739
  %v960 = vpack.c.b16 %v742, %v741
  %v961 = vpack.c.b16 %v744, %v743
  %v962 = vpack.c.b16 %v746, %v745
  %v963 = vpack.c.b16 %v748, %v747
  %v964 = vpack.c.b16 %v750, %v749
  %v965 = vpack.c.b16 %v752, %v751
  %v966 = vpack.c.b16 %v754, %v753
  %v967 = vpack.c.b16 %v756, %v755
  %v968 = vpack.c.b16 %v758, %v757
  %v969 = vpack.c.b16 %v760, %v759
  %v970 = vpack.c.b16 %v762, %v761
  %v971 = vpack.c.b16 %v764, %v763
  %v972 = vpack.c.b16 %v766, %v765
  %v973 = vpack.c.b16 %v768, %v767
  %v974 = vpack.c.b16 %v770, %v769
  %v975 = vpack.c.b16 %v772, %v771
  %v976 = vpack.c.b16 %v774, %v773
  %v977 = vpack.c.b16 %v776, %v775
  %v978 = vpack.c.b16 %v778, %v777
  %v979 = vpack.c.b16 %v780, %v779
  %v980 = vpack.c.b16 %v782, %v781
  %v981 = vpack.c.b16 %v784, %v783
  %v982 = vpack.c.b16 %v786, %v785
  %v983 = vpack.c.b16 %v788, %v787
  %v984 = vpack.c.b16 %v790, %v789
  %v985 = vpack.c.b16 %v792, %v791
  %v986 = vpack.c.b16 %v794, %v793
  %v987 = vpack.c.b16 %v796, %v795
  %v988 = vpack.c.b16 %v798, %v797
  %v989 = vpack.c.b16 %v800, %v799
  %v990 = vpack.c.b16 %v802, %v801
  %v991 = vpack.c.b16 %v804, %v803
  %v992 = vpack.c.b16 %v806, %v805
  %v993 = vpack.c.b16 %v808, %v807
  %v994 = vpack.c.b16 %v810, %v809
  %v995 = vpack.c.b16 %v812, %v811
  %v996 = vpack.c.b16 %v814, %v813
  %v997 = vpack.c.b16 %v816, %v815
  %v998 = vpack.c.b16 %v818, %v817
  %v999 = vpack.c.b16 %v820, %v819
  %v1000 = vpack.c.b16 %v822, %v821
  %v1001 = vpack.c.b16 %v824, %v823
  %v1002 = vpack.c.b16 %v826, %v825
  %v1003 = vpack.c.b16 %v828, %v827
  %v1004 = vpack.c.b16 %v830, %v829
  %v1005 = vpack.c.b16 %v832, %v831
  %v1006 = vpack.c.b16 %v834, %v833
  %v1007 = vpack.c.b16 %v836, %v835
  %v1008 = vpack.c.b16 %v838, %v837
  %v1009 = vpack.c.b16 %v840, %v839
  %v1010 = vpack.c.b16 %v842, %v841
  %v1011 = vpack.c.b16 %v844, %v843
  %v1012 = vpack.c.b16 %v846, %v845
  %v1013 = vpack.c.b16 %v848, %v847
  %v1014 = vpack.c.b16 %v850, %v849
  %v1015 = vpack.c.b16 %v852, %v851
  %v1016 = vpack.c.b16 %v854, %v853
  %v1017 = vpack.c.b16 %v856, %v855
  %v1018 = vpack.c.b16 %v858, %v857
  %v1019 = vpack.c.b16 %v860, %v859
  %v1020 = vpack.c.b16 %v862, %v861
  %v1021 = vpack.c.b16 %v864, %v863
  %v1022 = vpack.c.b16 %v866, %v865
  %v1023 = vpack.c.b16 %v868, %v867
  %v1024 = vpack.c.b16 %v870, %v869
  %v1025 = vpack.c.b16 %v872, %v871
  %v1026 = vpack.c.b16 %v874, %v873
  %v1027 = vpack.c.b16 %v876, %v875
  %v1028 = vpack.c.b16 %v878, %v877
  %v1029 = vpack.c.b16 %v880, %v879
  %v1030 = vpack.c.b16 %v882, %v881
  %v1031 = vpack.c.b16 %v884, %v883
  %v1032 = vpack.c.b16 %v886, %v885
  %v1033 = vpack.c.b16 %v888, %v887
  %v1034 = vpack.c.b16 %v890, %v889
  %v1035 = vpack.c.b16 %v892, %v891
  %v1036 = vpack.c.b16 %v894, %v893
  %v1037 = vpack.c.b16 %v896, %v895
  %v1038 = vpack.c.b16 %v898, %v897
  %v1039 = vpack.c.b16 %v900, %v899
  %v1040 = vpack.c.b16 %v902, %v901
  %v1041 = vpack.c.b16 %v904, %v903
  %v1042 = vpack.c.b16 %v906, %v905
  %v1043 = vpack.c.b16 %v908, %v907
  %v1044 = vpack.c.b16 %v910, %v909
  %v1045 = vpack.c.b16 %v912, %v911
  %v1046 = vpack.c.b16 %v914, %v913
  %v1047 = vpack.c.b16 %v916, %v915
  %v1048 = vpack.c.b16 %v918, %v917
  %v1049 = vpack.c.b16 %v920, %v919
  %v1050 = vpack.c.b16 %v922, %v921
  %v1051 = vpack.c.b16 %v924, %v923
  %v1052 = vpack.c.b16 %v926, %v925
  %v1053 = vpack.c.b16 %v928, %v927
  %v1054 = vpack.c.b16 %v930, %v929
  %v1055 = vpack.c.b16 %v932, %v931
  %v1056 = vpack.c.b16 %v934, %v933
  %v1057 = vpack.c.b16 %v936, %v935
  %v1058 = vpack.c.b16 %v938, %v937
  %v1059 = vpack.c.b16 %v940, %v939
  %v1060 = vpack.c.b16 %v942, %v941
  %v1061 = vpack.c.b16 %v944, %v943
  %v1062 = vpack.c.b16 %v945, %v945
  %vm1179 = vcmask 556032
  %v1181 = vsel %vm1179, %v239, 0
  %vm1183 = vcmask 1041408
  %v1185 = vsel %vm1183, %v1062, 0
  %1187 = vmatprep.subr.bf16.mxu0 0
  %1188 = vmatpush1.bf16.msra.mxu0 %v953
  %1189 = vmatprep.subr.bf16.mxu0 0
  %1190 = vmatpush1.bf16.msra.mxu0 %v952
  %1191 = vmatprep.subr.bf16.mxu0 0
  %1192 = vmatpush1.bf16.msra.mxu0 %v951
  %1193 = vmatprep.subr.bf16.mxu0 0
  %1194 = vmatpush1.bf16.msra.mxu0 %v950
  %1195 = vmatprep.subr.bf16.mxu0 0
  %1196 = vmatpush1.bf16.msra.mxu0 %v949
  %1197 = vmatprep.subr.bf16.mxu0 0
  %1198 = vmatpush1.bf16.msra.mxu0 %v948
  %1199 = vmatprep.subr.bf16.mxu0 0
  %1200 = vmatpush1.bf16.msra.mxu0 %v947
  %1201 = vmatprep.subr.bf16.mxu0 0
  %1202 = vmatpush1.bf16.msra.mxu0 %v946
  %1203 = vmatprep.subr.bf16.mxu0 0
  %1204 = vmatpush2.bf16.msra.mxu0 %v961
  %1205 = vmatprep.subr.bf16.mxu0 0
  %1206 = vmatpush2.bf16.msra.mxu0 %v960
  %1207 = vmatprep.subr.bf16.mxu0 0
  %1208 = vmatpush2.bf16.msra.mxu0 %v959
  %1209 = vmatprep.subr.bf16.mxu0 0
  %1210 = vmatpush2.bf16.msra.mxu0 %v958
  %1211 = vmatprep.subr.bf16.mxu0 0
  %1212 = vmatpush2.bf16.msra.mxu0 %v957
  %1213 = vmatprep.subr.bf16.mxu0 0
  %1214 = vmatpush2.bf16.msra.mxu0 %v956
  %1215 = vmatprep.subr.bf16.mxu0 0
  %1216 = vmatpush2.bf16.msra.mxu0 %v955
  %1217 = vmatprep.subr.bf16.mxu0 0
  %1218 = vmatpush2.bf16.msra.mxu0 %v954
  %1219 = vmatprep.mubr.bf16.mxu0 %v226
  %1220 = vmatmul.mubr.bf16.gmra.mxu0 %v225
  %v1221 = vpop.f32.mrf.mxu0
  %v1222 = vadd.f32 %v478, %v1221
  %v1223 = vpop.f32.mrf.mxu0
  %v1224 = vpop.f32.mrf.mxu0
  %v1225 = vpop.f32.mrf.mxu0
  %1226 = vdwg.mxu0
  %1227 = vmatprep.subr.bf16.mxu0 0
  %1228 = vmatpush1.bf16.msra.mxu0 %v969
  %1229 = vmatprep.subr.bf16.mxu0 0
  %1230 = vmatpush1.bf16.msra.mxu0 %v968
  %1231 = vmatprep.subr.bf16.mxu0 0
  %1232 = vmatpush1.bf16.msra.mxu0 %v967
  %1233 = vmatprep.subr.bf16.mxu0 0
  %1234 = vmatpush1.bf16.msra.mxu0 %v966
  %1235 = vmatprep.subr.bf16.mxu0 0
  %1236 = vmatpush1.bf16.msra.mxu0 %v965
  %1237 = vmatprep.subr.bf16.mxu0 0
  %1238 = vmatpush1.bf16.msra.mxu0 %v964
  %1239 = vmatprep.subr.bf16.mxu0 0
  %1240 = vmatpush1.bf16.msra.mxu0 %v963
  %1241 = vmatprep.subr.bf16.mxu0 0
  %1242 = vmatpush1.bf16.msra.mxu0 %v962
  %1243 = vmatprep.subr.bf16.mxu0 0
  %1244 = vmatpush2.bf16.msra.mxu0 %v977
  %1245 = vmatprep.subr.bf16.mxu0 0
  %1246 = vmatpush2.bf16.msra.mxu0 %v976
  %1247 = vmatprep.subr.bf16.mxu0 0
  %1248 = vmatpush2.bf16.msra.mxu0 %v975
  %1249 = vmatprep.subr.bf16.mxu0 0
  %1250 = vmatpush2.bf16.msra.mxu0 %v974
  %1251 = vmatprep.subr.bf16.mxu0 0
  %1252 = vmatpush2.bf16.msra.mxu0 %v973
  %1253 = vmatprep.subr.bf16.mxu0 0
  %1254 = vmatpush2.bf16.msra.mxu0 %v972
  %1255 = vmatprep.subr.bf16.mxu0 0
  %1256 = vmatpush2.bf16.msra.mxu0 %v971
  %1257 = vmatprep.subr.bf16.mxu0 0
  %1258 = vmatpush2.bf16.msra.mxu0 %v970
  %1259 = vmatprep.mubr.bf16.mxu0 %v228
  %1260 = vmatmul.mubr.bf16.gmra.mxu0 %v227
  %v1261 = vpop.f32.mrf.mxu0
  %v1262 = vadd.f32 %v1222, %v1261
  %v1263 = vpop.f32.mrf.mxu0
  %v1264 = vpop.f32.mrf.mxu0
  %v1265 = vpop.f32.mrf.mxu0
  %1266 = vdwg.mxu0
  %1267 = vmatprep.subr.bf16.mxu0 0
  %1268 = vmatpush1.bf16.msra.mxu0 %v985
  %1269 = vmatprep.subr.bf16.mxu0 0
  %1270 = vmatpush1.bf16.msra.mxu0 %v984
  %1271 = vmatprep.subr.bf16.mxu0 0
  %1272 = vmatpush1.bf16.msra.mxu0 %v983
  %1273 = vmatprep.subr.bf16.mxu0 0
  %1274 = vmatpush1.bf16.msra.mxu0 %v982
  %1275 = vmatprep.subr.bf16.mxu0 0
  %1276 = vmatpush1.bf16.msra.mxu0 %v981
  %1277 = vmatprep.subr.bf16.mxu0 0
  %1278 = vmatpush1.bf16.msra.mxu0 %v980
  %1279 = vmatprep.subr.bf16.mxu0 0
  %1280 = vmatpush1.bf16.msra.mxu0 %v979
  %1281 = vmatprep.subr.bf16.mxu0 0
  %1282 = vmatpush1.bf16.msra.mxu0 %v978
  %1283 = vmatprep.subr.bf16.mxu0 0
  %1284 = vmatpush2.bf16.msra.mxu0 %v993
  %1285 = vmatprep.subr.bf16.mxu0 0
  %1286 = vmatpush2.bf16.msra.mxu0 %v992
  %1287 = vmatprep.subr.bf16.mxu0 0
  %1288 = vmatpush2.bf16.msra.mxu0 %v991
  %1289 = vmatprep.subr.bf16.mxu0 0
  %1290 = vmatpush2.bf16.msra.mxu0 %v990
  %1291 = vmatprep.subr.bf16.mxu0 0
  %1292 = vmatpush2.bf16.msra.mxu0 %v989
  %1293 = vmatprep.subr.bf16.mxu0 0
  %1294 = vmatpush2.bf16.msra.mxu0 %v988
  %1295 = vmatprep.subr.bf16.mxu0 0
  %1296 = vmatpush2.bf16.msra.mxu0 %v987
  %1297 = vmatprep.subr.bf16.mxu0 0
  %1298 = vmatpush2.bf16.msra.mxu0 %v986
  %1299 = vmatprep.mubr.bf16.mxu0 %v230
  %1300 = vmatmul.mubr.bf16.gmra.mxu0 %v229
  %v1301 = vpop.f32.mrf.mxu0
  %v1302 = vadd.f32 %v1262, %v1301
  %v1303 = vpop.f32.mrf.mxu0
  %v1304 = vpop.f32.mrf.mxu0
  %v1305 = vpop.f32.mrf.mxu0
  %1306 = vdwg.mxu0
  %1307 = vmatprep.subr.bf16.mxu0 0
  %1308 = vmatpush1.bf16.msra.mxu0 %v1001
  %1309 = vmatprep.subr.bf16.mxu0 0
  %1310 = vmatpush1.bf16.msra.mxu0 %v1000
  %1311 = vmatprep.subr.bf16.mxu0 0
  %1312 = vmatpush1.bf16.msra.mxu0 %v999
  %1313 = vmatprep.subr.bf16.mxu0 0
  %1314 = vmatpush1.bf16.msra.mxu0 %v998
  %1315 = vmatprep.subr.bf16.mxu0 0
  %1316 = vmatpush1.bf16.msra.mxu0 %v997
  %1317 = vmatprep.subr.bf16.mxu0 0
  %1318 = vmatpush1.bf16.msra.mxu0 %v996
  %1319 = vmatprep.subr.bf16.mxu0 0
  %1320 = vmatpush1.bf16.msra.mxu0 %v995
  %1321 = vmatprep.subr.bf16.mxu0 0
  %1322 = vmatpush1.bf16.msra.mxu0 %v994
  %1323 = vmatprep.subr.bf16.mxu0 0
  %1324 = vmatpush2.bf16.msra.mxu0 %v1009
  %1325 = vmatprep.subr.bf16.mxu0 0
  %1326 = vmatpush2.bf16.msra.mxu0 %v1008
  %1327 = vmatprep.subr.bf16.mxu0 0
  %1328 = vmatpush2.bf16.msra.mxu0 %v1007
  %1329 = vmatprep.subr.bf16.mxu0 0
  %1330 = vmatpush2.bf16.msra.mxu0 %v1006
  %1331 = vmatprep.subr.bf16.mxu0 0
  %1332 = vmatpush2.bf16.msra.mxu0 %v1005
  %1333 = vmatprep.subr.bf16.mxu0 0
  %1334 = vmatpush2.bf16.msra.mxu0 %v1004
  %1335 = vmatprep.subr.bf16.mxu0 0
  %1336 = vmatpush2.bf16.msra.mxu0 %v1003
  %1337 = vmatprep.subr.bf16.mxu0 0
  %1338 = vmatpush2.bf16.msra.mxu0 %v1002
  %1339 = vmatprep.mubr.bf16.mxu0 %v232
  %1340 = vmatmul.mubr.bf16.gmra.mxu0 %v231
  %v1341 = vpop.f32.mrf.mxu0
  %v1342 = vadd.f32 %v1302, %v1341
  %v1343 = vpop.f32.mrf.mxu0
  %v1344 = vpop.f32.mrf.mxu0
  %v1345 = vpop.f32.mrf.mxu0
  %1346 = vdwg.mxu0
  %1347 = vmatprep.subr.bf16.mxu0 0
  %1348 = vmatpush1.bf16.msra.mxu0 %v1017
  %1349 = vmatprep.subr.bf16.mxu0 0
  %1350 = vmatpush1.bf16.msra.mxu0 %v1016
  %1351 = vmatprep.subr.bf16.mxu0 0
  %1352 = vmatpush1.bf16.msra.mxu0 %v1015
  %1353 = vmatprep.subr.bf16.mxu0 0
  %1354 = vmatpush1.bf16.msra.mxu0 %v1014
  %1355 = vmatprep.subr.bf16.mxu0 0
  %1356 = vmatpush1.bf16.msra.mxu0 %v1013
  %1357 = vmatprep.subr.bf16.mxu0 0
  %1358 = vmatpush1.bf16.msra.mxu0 %v1012
  %1359 = vmatprep.subr.bf16.mxu0 0
  %1360 = vmatpush1.bf16.msra.mxu0 %v1011
  %1361 = vmatprep.subr.bf16.mxu0 0
  %1362 = vmatpush1.bf16.msra.mxu0 %v1010
  %1363 = vmatprep.subr.bf16.mxu0 0
  %1364 = vmatpush2.bf16.msra.mxu0 %v1025
  %1365 = vmatprep.subr.bf16.mxu0 0
  %1366 = vmatpush2.bf16.msra.mxu0 %v1024
  %1367 = vmatprep.subr.bf16.mxu0 0
  %1368 = vmatpush2.bf16.msra.mxu0 %v1023
  %1369 = vmatprep.subr.bf16.mxu0 0
  %1370 = vmatpush2.bf16.msra.mxu0 %v1022
  %1371 = vmatprep.subr.bf16.mxu0 0
  %1372 = vmatpush2.bf16.msra.mxu0 %v1021
  %1373 = vmatprep.subr.bf16.mxu0 0
  %1374 = vmatpush2.bf16.msra.mxu0 %v1020
  %1375 = vmatprep.subr.bf16.mxu0 0
  %1376 = vmatpush2.bf16.msra.mxu0 %v1019
  %1377 = vmatprep.subr.bf16.mxu0 0
  %1378 = vmatpush2.bf16.msra.mxu0 %v1018
  %1379 = vmatprep.mubr.bf16.mxu0 %v234
  %1380 = vmatmul.mubr.bf16.gmra.mxu0 %v233
  %v1381 = vpop.f32.mrf.mxu0
  %v1382 = vadd.f32 %v1342, %v1381
  %v1383 = vpop.f32.mrf.mxu0
  %v1384 = vpop.f32.mrf.mxu0
  %v1385 = vpop.f32.mrf.mxu0
  %1386 = vdwg.mxu0
  %1387 = vmatprep.subr.bf16.mxu0 0
  %1388 = vmatpush1.bf16.msra.mxu0 %v1033
  %1389 = vmatprep.subr.bf16.mxu0 0
  %1390 = vmatpush1.bf16.msra.mxu0 %v1032
  %1391 = vmatprep.subr.bf16.mxu0 0
  %1392 = vmatpush1.bf16.msra.mxu0 %v1031
  %1393 = vmatprep.subr.bf16.mxu0 0
  %1394 = vmatpush1.bf16.msra.mxu0 %v1030
  %1395 = vmatprep.subr.bf16.mxu0 0
  %1396 = vmatpush1.bf16.msra.mxu0 %v1029
  %1397 = vmatprep.subr.bf16.mxu0 0
  %1398 = vmatpush1.bf16.msra.mxu0 %v1028
  %1399 = vmatprep.subr.bf16.mxu0 0
  %1400 = vmatpush1.bf16.msra.mxu0 %v1027
  %1401 = vmatprep.subr.bf16.mxu0 0
  %1402 = vmatpush1.bf16.msra.mxu0 %v1026
  %1403 = vmatprep.subr.bf16.mxu0 0
  %1404 = vmatpush2.bf16.msra.mxu0 %v1041
  %1405 = vmatprep.subr.bf16.mxu0 0
  %1406 = vmatpush2.bf16.msra.mxu0 %v1040
  %1407 = vmatprep.subr.bf16.mxu0 0
  %1408 = vmatpush2.bf16.msra.mxu0 %v1039
  %1409 = vmatprep.subr.bf16.mxu0 0
  %1410 = vmatpush2.bf16.msra.mxu0 %v1038
  %1411 = vmatprep.subr.bf16.mxu0 0
  %1412 = vmatpush2.bf16.msra.mxu0 %v1037
  %1413 = vmatprep.subr.bf16.mxu0 0
  %1414 = vmatpush2.bf16.msra.mxu0 %v1036
  %1415 = vmatprep.subr.bf16.mxu0 0
  %1416 = vmatpush2.bf16.msra.mxu0 %v1035
  %1417 = vmatprep.subr.bf16.mxu0 0
  %1418 = vmatpush2.bf16.msra.mxu0 %v1034
  %1419 = vmatprep.mubr.bf16.mxu0 %v236
  %1420 = vmatmul.mubr.bf16.gmra.mxu0 %v235
  %v1421 = vpop.f32.mrf.mxu0
  %v1422 = vadd.f32 %v1382, %v1421
  %v1423 = vpop.f32.mrf.mxu0
  %v1424 = vpop.f32.mrf.mxu0
  %v1425 = vpop.f32.mrf.mxu0
  %1426 = vdwg.mxu0
  %1427 = vmatprep.subr.bf16.mxu0 0
  %1428 = vmatpush1.bf16.msra.mxu0 %v1049
  %1429 = vmatprep.subr.bf16.mxu0 0
  %1430 = vmatpush1.bf16.msra.mxu0 %v1048
  %1431 = vmatprep.subr.bf16.mxu0 0
  %1432 = vmatpush1.bf16.msra.mxu0 %v1047
  %1433 = vmatprep.subr.bf16.mxu0 0
  %1434 = vmatpush1.bf16.msra.mxu0 %v1046
  %1435 = vmatprep.subr.bf16.mxu0 0
  %1436 = vmatpush1.bf16.msra.mxu0 %v1045
  %1437 = vmatprep.subr.bf16.mxu0 0
  %1438 = vmatpush1.bf16.msra.mxu0 %v1044
  %1439 = vmatprep.subr.bf16.mxu0 0
  %1440 = vmatpush1.bf16.msra.mxu0 %v1043
  %1441 = vmatprep.subr.bf16.mxu0 0
  %1442 = vmatpush1.bf16.msra.mxu0 %v1042
  %1443 = vmatprep.subr.bf16.mxu0 0
  %1444 = vmatpush2.bf16.msra.mxu0 %v1057
  %1445 = vmatprep.subr.bf16.mxu0 0
  %1446 = vmatpush2.bf16.msra.mxu0 %v1056
  %1447 = vmatprep.subr.bf16.mxu0 0
  %1448 = vmatpush2.bf16.msra.mxu0 %v1055
  %1449 = vmatprep.subr.bf16.mxu0 0
  %1450 = vmatpush2.bf16.msra.mxu0 %v1054
  %1451 = vmatprep.subr.bf16.mxu0 0
  %1452 = vmatpush2.bf16.msra.mxu0 %v1053
  %1453 = vmatprep.subr.bf16.mxu0 0
  %1454 = vmatpush2.bf16.msra.mxu0 %v1052
  %1455 = vmatprep.subr.bf16.mxu0 0
  %1456 = vmatpush2.bf16.msra.mxu0 %v1051
  %1457 = vmatprep.subr.bf16.mxu0 0
  %1458 = vmatpush2.bf16.msra.mxu0 %v1050
  %1459 = vmatprep.mubr.bf16.mxu0 %v238
  %1460 = vmatmul.mubr.bf16.gmra.mxu0 %v237
  %v1461 = vpop.f32.mrf.mxu0
  %v1462 = vadd.f32 %v1422, %v1461
  %v1463 = vpop.f32.mrf.mxu0
  %v1464 = vpop.f32.mrf.mxu0
  %v1465 = vpop.f32.mrf.mxu0
  %1466 = vdwg.mxu0
  %1467 = vmatprep.subr.bf16.mxu0 0
  %1468 = vmatpush1.bf16.msra.mxu0 0
  %1469 = vmatprep.subr.bf16.mxu0 0
  %1470 = vmatpush1.bf16.msra.mxu0 0
  %1471 = vmatprep.subr.bf16.mxu0 0
  %1472 = vmatpush1.bf16.msra.mxu0 0
  %1473 = vmatprep.subr.bf16.mxu0 0
  %1474 = vmatpush1.bf16.msra.mxu0 %v1185
  %1475 = vmatprep.subr.bf16.mxu0 0
  %1476 = vmatpush1.bf16.msra.mxu0 %v1061
  %1477 = vmatprep.subr.bf16.mxu0 0
  %1478 = vmatpush1.bf16.msra.mxu0 %v1060
  %1479 = vmatprep.subr.bf16.mxu0 0
  %1480 = vmatpush1.bf16.msra.mxu0 %v1059
  %1481 = vmatprep.subr.bf16.mxu0 0
  %1482 = vmatpush1.bf16.msra.mxu0 %v1058
  %1483 = vmatprep.subr.bf16.mxu0 0
  %1484 = vmatpush2.bf16.msra.mxu0 0
  %1485 = vmatprep.subr.bf16.mxu0 0
  %1486 = vmatpush2.bf16.msra.mxu0 0
  %1487 = vmatprep.subr.bf16.mxu0 0
  %1488 = vmatpush2.bf16.msra.mxu0 0
  %1489 = vmatprep.subr.bf16.mxu0 0
  %1490 = vmatpush2.bf16.msra.mxu0 0
  %1491 = vmatprep.subr.bf16.mxu0 0
  %1492 = vmatpush2.bf16.msra.mxu0 0
  %1493 = vmatprep.subr.bf16.mxu0 0
  %1494 = vmatpush2.bf16.msra.mxu0 0
  %1495 = vmatprep.subr.bf16.mxu0 0
  %1496 = vmatpush2.bf16.msra.mxu0 0
  %1497 = vmatprep.subr.bf16.mxu0 0
  %1498 = vmatpush2.bf16.msra.mxu0 0
  %1499 = vmatprep.mubr.bf16.mxu0 0
  %1500 = vmatmul.mubr.bf16.gmra.mxu0 %v1181
  %v1501 = vpop.f32.mrf.mxu0
  %v1502 = vadd.f32 %v1462, %v1501
  %v1503 = vpop.f32.mrf.mxu0
  %v1504 = vpop.f32.mrf.mxu0
  %v1505 = vpop.f32.mrf.mxu0
  %1506 = vdwg.mxu0
  %vm1507 = vcmp.gt.f32.partialorder %v1502, 0.0
  %v1508 = vmul.f32 %v1502, 0.01
  %v1509 = vsel %vm1507, %v1502, %v1508
  %v1510 = vld [vmem:[%s3] sm:$0xff]
  %v1511 = vld [vmem:[%s3 + $0x8] sm:$0xff]
  %v1512 = vld [vmem:[%s3 + $0x10] sm:$0xff]
  %v1513 = vld [vmem:[%s3 + $0x18] sm:$0xff]
  %v1514 = vld [vmem:[%s3 + $0x20] sm:$0xff]
  %v1515 = vld [vmem:[%s3 + $0x28] sm:$0xff]
  %v1516 = vld [vmem:[%s3 + $0x30] sm:$0xff]
  %v1517 = vld [vmem:[%s3 + $0x38] sm:$0xff]
  %v1518 = vld [vmem:[%s4] sm:$0x1]
  %v1520 = vlaneseq
  %v1521 = vshrl.u32 %v1520, 7
  %v1522 = vsub.s32 0, %v1521
  %v1523 = vrot.slane %v1518, %v1522
  %vm1525 = vcmask 523264
  %v1527 = vsel %vm1525, %v1509, 0
  %1529 = vmatprep.subr.mxu0 0.0
  %1530 = vmatpush1.msra.mxu0 0.0
  %1531 = vmatprep.subr.mxu0 0.0
  %1532 = vmatpush1.msra.mxu0 0.0
  %1533 = vmatprep.subr.mxu0 0.0
  %1534 = vmatpush1.msra.mxu0 0.0
  %1535 = vmatprep.subr.mxu0 0.0
  %1536 = vmatpush1.msra.mxu0 0.0
  %1537 = vmatprep.subr.mxu0 0.0
  %1538 = vmatpush1.msra.mxu0 0.0
  %1539 = vmatprep.subr.mxu0 0.0
  %1540 = vmatpush1.msra.mxu0 0.0
  %1541 = vmatprep.subr.mxu0 0.0
  %1542 = vmatpush1.msra.mxu0 0.0
  %1543 = vmatprep.subr.mxu0 0.0
  %1544 = vmatpush1.msra.mxu0 0.0
  %1545 = vmatprep.subr.mxu0 0.0
  %1546 = vmatpush1.msra.mxu0 %v1517
  %1547 = vmatprep.subr.mxu0 0.0
  %1548 = vmatpush1.msra.mxu0 %v1516
  %1549 = vmatprep.subr.mxu0 0.0
  %1550 = vmatpush1.msra.mxu0 %v1515
  %1551 = vmatprep.subr.mxu0 0.0
  %1552 = vmatpush1.msra.mxu0 %v1514
  %1553 = vmatprep.subr.mxu0 0.0
  %1554 = vmatpush1.msra.mxu0 %v1513
  %1555 = vmatprep.subr.mxu0 0.0
  %1556 = vmatpush1.msra.mxu0 %v1512
  %1557 = vmatprep.subr.mxu0 0.0
  %1558 = vmatpush1.msra.mxu0 %v1511
  %1559 = vmatprep.subr.mxu0 0.0
  %1560 = vmatpush1.msra.mxu0 %v1510
  %1561 = vmatprep.subr.mxu0 0.0
  %1562 = vmatpush2.msra.mxu0 0.0
  %1563 = vmatprep.subr.mxu0 0.0
  %1564 = vmatpush2.msra.mxu0 0.0
  %1565 = vmatprep.subr.mxu0 0.0
  %1566 = vmatpush2.msra.mxu0 0.0
  %1567 = vmatprep.subr.mxu0 0.0
  %1568 = vmatpush2.msra.mxu0 0.0
  %1569 = vmatprep.subr.mxu0 0.0
  %1570 = vmatpush2.msra.mxu0 0.0
  %1571 = vmatprep.subr.mxu0 0.0
  %1572 = vmatpush2.msra.mxu0 0.0
  %1573 = vmatprep.subr.mxu0 0.0
  %1574 = vmatpush2.msra.mxu0 0.0
  %1575 = vmatprep.subr.mxu0 0.0
  %1576 = vmatpush2.msra.mxu0 0.0
  %1577 = vmatprep.subr.mxu0 0.0
  %1578 = vmatpush2.msra.mxu0 0.0
  %1579 = vmatprep.subr.mxu0 0.0
  %1580 = vmatpush2.msra.mxu0 0.0
  %1581 = vmatprep.subr.mxu0 0.0
  %1582 = vmatpush2.msra.mxu0 0.0
  %1583 = vmatprep.subr.mxu0 0.0
  %1584 = vmatpush2.msra.mxu0 0.0
  %1585 = vmatprep.subr.mxu0 0.0
  %1586 = vmatpush2.msra.mxu0 0.0
  %1587 = vmatprep.subr.mxu0 0.0
  %1588 = vmatpush2.msra.mxu0 0.0
  %1589 = vmatprep.subr.mxu0 0.0
  %1590 = vmatpush2.msra.mxu0 0.0
  %1591 = vmatprep.subr.mxu0 0.0
  %1592 = vmatpush2.msra.mxu0 0.0
  %1593 = vmatprep.mubr.f32.mxu0 0.0
  %1594 = vmatmul.mubr.f32.gmra.mxu0 %v1527
  %v1595 = vpop.f32.mrf.mxu0
  %v1596 = vadd.f32 %v1523, %v1595
  %v1597 = vpop.f32.mrf.mxu0
  %1598 = vdwg.mxu0
  %vm1599 = vcmp.gt.f32.partialorder %v1596, 0.0
  %v1600 = vmul.f32 %v1596, 0.01
  %v1601 = vsel %vm1599, %v1596, %v1600
  %v1602 = vld [vmem:[%s5] sm:$0xff]
  %v1603 = vld [vmem:[%s5 + $0x8] sm:$0xff]
  %v1604 = vld [vmem:[%s5 + $0x10] sm:$0xff]
  %v1605 = vld [vmem:[%s5 + $0x18] sm:$0xff]
  %v1606 = vld [vmem:[%s6] sm:$0x1]
  %v1608 = vlaneseq
  %v1609 = vshrl.u32 %v1608, 7
  %v1610 = vsub.s32 0, %v1609
  %v1611 = vrot.slane %v1606, %v1610
  %vm1613 = vcmask 261120
  %v1615 = vsel %vm1613, %v1601, 0
  %1617 = vmatprep.subr.mxu0 0.0
  %1618 = vmatpush1.msra.mxu0 0.0
  %1619 = vmatprep.subr.mxu0 0.0
  %1620 = vmatpush1.msra.mxu0 0.0
  %1621 = vmatprep.subr.mxu0 0.0
  %1622 = vmatpush1.msra.mxu0 0.0
  %1623 = vmatprep.subr.mxu0 0.0
  %1624 = vmatpush1.msra.mxu0 0.0
  %1625 = vmatprep.subr.mxu0 0.0
  %1626 = vmatpush1.msra.mxu0 0.0
  %1627 = vmatprep.subr.mxu0 0.0
  %1628 = vmatpush1.msra.mxu0 0.0
  %1629 = vmatprep.subr.mxu0 0.0
  %1630 = vmatpush1.msra.mxu0 0.0
  %1631 = vmatprep.subr.mxu0 0.0
  %1632 = vmatpush1.msra.mxu0 0.0
  %1633 = vmatprep.subr.mxu0 0.0
  %1634 = vmatpush1.msra.mxu0 0.0
  %1635 = vmatprep.subr.mxu0 0.0
  %1636 = vmatpush1.msra.mxu0 0.0
  %1637 = vmatprep.subr.mxu0 0.0
  %1638 = vmatpush1.msra.mxu0 0.0
  %1639 = vmatprep.subr.mxu0 0.0
  %1640 = vmatpush1.msra.mxu0 0.0
  %1641 = vmatprep.subr.mxu0 0.0
  %1642 = vmatpush1.msra.mxu0 %v1605
  %1643 = vmatprep.subr.mxu0 0.0
  %1644 = vmatpush1.msra.mxu0 %v1604
  %1645 = vmatprep.subr.mxu0 0.0
  %1646 = vmatpush1.msra.mxu0 %v1603
  %1647 = vmatprep.subr.mxu0 0.0
  %1648 = vmatpush1.msra.mxu0 %v1602
  %1649 = vmatprep.subr.mxu0 0.0
  %1650 = vmatpush2.msra.mxu0 0.0
  %1651 = vmatprep.subr.mxu0 0.0
  %1652 = vmatpush2.msra.mxu0 0.0
  %1653 = vmatprep.subr.mxu0 0.0
  %1654 = vmatpush2.msra.mxu0 0.0
  %1655 = vmatprep.subr.mxu0 0.0
  %1656 = vmatpush2.msra.mxu0 0.0
  %1657 = vmatprep.subr.mxu0 0.0
  %1658 = vmatpush2.msra.mxu0 0.0
  %1659 = vmatprep.subr.mxu0 0.0
  %1660 = vmatpush2.msra.mxu0 0.0
  %1661 = vmatprep.subr.mxu0 0.0
  %1662 = vmatpush2.msra.mxu0 0.0
  %1663 = vmatprep.subr.mxu0 0.0
  %1664 = vmatpush2.msra.mxu0 0.0
  %1665 = vmatprep.subr.mxu0 0.0
  %1666 = vmatpush2.msra.mxu0 0.0
  %1667 = vmatprep.subr.mxu0 0.0
  %1668 = vmatpush2.msra.mxu0 0.0
  %1669 = vmatprep.subr.mxu0 0.0
  %1670 = vmatpush2.msra.mxu0 0.0
  %1671 = vmatprep.subr.mxu0 0.0
  %1672 = vmatpush2.msra.mxu0 0.0
  %1673 = vmatprep.subr.mxu0 0.0
  %1674 = vmatpush2.msra.mxu0 0.0
  %1675 = vmatprep.subr.mxu0 0.0
  %1676 = vmatpush2.msra.mxu0 0.0
  %1677 = vmatprep.subr.mxu0 0.0
  %1678 = vmatpush2.msra.mxu0 0.0
  %1679 = vmatprep.subr.mxu0 0.0
  %1680 = vmatpush2.msra.mxu0 0.0
  %1681 = vmatprep.mubr.f32.mxu0 0.0
  %1682 = vmatmul.mubr.f32.gmra.mxu0 %v1615
  %v1683 = vpop.f32.mrf.mxu0
  %v1684 = vadd.f32 %v1611, %v1683
  %v1685 = vpop.f32.mrf.mxu0
  %1686 = vdwg.mxu0
  %vm1687 = vcmp.gt.f32.partialorder %v1684, 0.0
  %v1688 = vmul.f32 %v1684, 0.01
  %v1689 = vsel %vm1687, %v1684, %v1688
  %v1690 = vld [vmem:[%s7] sm:$0xff]
  %v1691 = vld [vmem:[%s7 + $0x8] sm:$0xff]
  %v1692 = vld [vmem:[#allocation2] sm:$0x1]
  %v1694 = vlaneseq
  %v1695 = vshrl.u32 %v1694, 7
  %v1696 = vsub.s32 0, %v1695
  %v1697 = vrot.slane %v1692, %v1696
  %vm1699 = vcmask 130048
  %v1701 = vsel %vm1699, %v1689, 0
  %1703 = vmatprep.subr.mxu0 0.0
  %1704 = vmatpush1.msra.mxu0 0.0
  %1705 = vmatprep.subr.mxu0 0.0
  %1706 = vmatpush1.msra.mxu0 0.0
  %1707 = vmatprep.subr.mxu0 0.0
  %1708 = vmatpush1.msra.mxu0 0.0
  %1709 = vmatprep.subr.mxu0 0.0
  %1710 = vmatpush1.msra.mxu0 0.0
  %1711 = vmatprep.subr.mxu0 0.0
  %1712 = vmatpush1.msra.mxu0 0.0
  %1713 = vmatprep.subr.mxu0 0.0
  %1714 = vmatpush1.msra.mxu0 0.0
  %1715 = vmatprep.subr.mxu0 0.0
  %1716 = vmatpush1.msra.mxu0 0.0
  %1717 = vmatprep.subr.mxu0 0.0
  %1718 = vmatpush1.msra.mxu0 0.0
  %1719 = vmatprep.subr.mxu0 0.0
  %1720 = vmatpush1.msra.mxu0 0.0
  %1721 = vmatprep.subr.mxu0 0.0
  %1722 = vmatpush1.msra.mxu0 0.0
  %1723 = vmatprep.subr.mxu0 0.0
  %1724 = vmatpush1.msra.mxu0 0.0
  %1725 = vmatprep.subr.mxu0 0.0
  %1726 = vmatpush1.msra.mxu0 0.0
  %1727 = vmatprep.subr.mxu0 0.0
  %1728 = vmatpush1.msra.mxu0 0.0
  %1729 = vmatprep.subr.mxu0 0.0
  %1730 = vmatpush1.msra.mxu0 0.0
  %1731 = vmatprep.subr.mxu0 0.0
  %1732 = vmatpush1.msra.mxu0 %v1691
  %1733 = vmatprep.subr.mxu0 0.0
  %1734 = vmatpush1.msra.mxu0 %v1690
  %1735 = vmatprep.subr.mxu0 0.0
  %1736 = vmatpush2.msra.mxu0 0.0
  %1737 = vmatprep.subr.mxu0 0.0
  %1738 = vmatpush2.msra.mxu0 0.0
  %1739 = vmatprep.subr.mxu0 0.0
  %1740 = vmatpush2.msra.mxu0 0.0
  %1741 = vmatprep.subr.mxu0 0.0
  %1742 = vmatpush2.msra.mxu0 0.0
  %1743 = vmatprep.subr.mxu0 0.0
  %1744 = vmatpush2.msra.mxu0 0.0
  %1745 = vmatprep.subr.mxu0 0.0
  %1746 = vmatpush2.msra.mxu0 0.0
  %1747 = vmatprep.subr.mxu0 0.0
  %1748 = vmatpush2.msra.mxu0 0.0
  %1749 = vmatprep.subr.mxu0 0.0
  %1750 = vmatpush2.msra.mxu0 0.0
  %1751 = vmatprep.subr.mxu0 0.0
  %1752 = vmatpush2.msra.mxu0 0.0
  %1753 = vmatprep.subr.mxu0 0.0
  %1754 = vmatpush2.msra.mxu0 0.0
  %1755 = vmatprep.subr.mxu0 0.0
  %1756 = vmatpush2.msra.mxu0 0.0
  %1757 = vmatprep.subr.mxu0 0.0
  %1758 = vmatpush2.msra.mxu0 0.0
  %1759 = vmatprep.subr.mxu0 0.0
  %1760 = vmatpush2.msra.mxu0 0.0
  %1761 = vmatprep.subr.mxu0 0.0
  %1762 = vmatpush2.msra.mxu0 0.0
  %1763 = vmatprep.subr.mxu0 0.0
  %1764 = vmatpush2.msra.mxu0 0.0
  %1765 = vmatprep.subr.mxu0 0.0
  %1766 = vmatpush2.msra.mxu0 0.0
  %1767 = vmatprep.mubr.f32.mxu0 0.0
  %1768 = vmatmul.mubr.f32.gmra.mxu0 %v1701
  %v1769 = vpop.f32.mrf.mxu0
  %v1770 = vadd.f32 %v1697, %v1769
  %v1771 = vpop.f32.mrf.mxu0
  %1772 = vdwg.mxu0
  %v1773 = vxor.u32 %v1770, 2147483648
  %v1774 = vmul.f32 %v1773, 1.442695
  %v1775 = vpow.pop %v1774
  %v1776 = vadd.f32 %v1775, 1.0
  %v1777 = vrcp.pop %v1776
  %v1778 = vmul.f32 1.0, %v1777
  %vm1779 = vcmask 7168
  %1780 = vst.msk [vmem:[%s9] sm:$0xff] %vm1779, %v1778
  %1782 = vrot.lane.b32.xlu0 %v1770, 1
  %v1783 = vpop.permute.xlu0 %1782
  %vm1785 = vcmask 15368
  %1786 = vst.msk [vmem:[%s9] sm:$0xff] %vm1785, %v1783
  // Predicated region
  $region38: #{tpu_custom_call.1} parent=0 // pred_check
    _
  $region39: #{tpu_custom_call.1} parent=0 // pred_check_branch
    %1788 = sbr.rel (0) target = $region41
  $region40: #{tpu_custom_call.1} parent=0 // pred_region
    _
  $region41: #{tpu_custom_call.1} parent=0 // pred_fallthru
    _
  // Predicated region
  $region42: #{tpu_custom_call.1} parent=0 // pred_check
    _
  $region43: #{tpu_custom_call.1} parent=0 // pred_check_branch
    %1790 = sbr.rel (0) target = $region45
  $region44: #{tpu_custom_call.1} parent=0 // pred_region
    _
  $region45: #{tpu_custom_call.1} parent=0 // pred_fallthru
    _

</llo_original>
